<compile_context>
chip_gen: v5e
topology: v5e:2x2
jax: 0.10.0
libtpu: 0.0.40
codegen_flags: <defaults>
</compile_context>

<pallas_src>
import jax
import jax.numpy as jnp
from jax import lax
from jax.experimental import pallas as pl
from jax.experimental.pallas import tpu as pltpu


# ------------------------------ fused kernel ---------------------------------

def _full_spec(shape):
    """Whole-array BlockSpec (grid-less call → index_map takes no args)."""
    return pl.BlockSpec(shape, lambda *_: (0,) * len(shape))


def _make_fused_kernel(T, B, I, H):
    """All three LSTM layers must share hidden size H (true here: 32)."""
    G = 4 * H  # gate width per layer (== 128 at these shapes)

    def kernel(x_ref, w_ref, b_ref, s_ref, wh_ref, bh_ref, out_ref,
               xw0_scr, h2_scr):
        # ---- hoisted constants (computed once, reused by every step) --------
        lane = lax.broadcasted_iota(jnp.int32, (B, G), 1)
        is_g = jnp.logical_and(lane >= 2 * H, lane < 3 * H)
        # sigmoid(scale*x)*scale + shift == sigmoid(x) on i/f/o lanes,
        #                                   tanh(x)    on g lanes.
        g_scale = jnp.where(is_g, 2.0, 1.0).astype(jnp.float32)
        g_shift = jnp.where(is_g, -1.0, 0.0).astype(jnp.float32)

        # ---- packed bf16 weights, sliced once at static sublane offsets -----
        wih0 = w_ref[0:I, :]                       # (I, 4H)
        whh0 = w_ref[I:I + H, :]                   # (H, 4H)
        wih1 = w_ref[I + H:I + 2 * H, :]
        whh1 = w_ref[I + 2 * H:I + 3 * H, :]
        wih2 = w_ref[I + 3 * H:I + 4 * H, :]
        whh2 = w_ref[I + 4 * H:I + 5 * H, :]

        b1 = jnp.broadcast_to(b_ref[1:2, :], (B, G))   # hoisted broadcasts
        b2 = jnp.broadcast_to(b_ref[2:3, :], (B, G))

        # ---- hoisted layer-0 input projection (+ bias folded in) ------------
        xw0_scr[...] = (jnp.dot(x_ref[...], wih0,
                                preferred_element_type=jnp.float32)
                        + b_ref[0:1, :])

        # ---- init states (packed as 6 stacked (B,H) blocks) ------------------
        h0 = s_ref[0 * B:1 * B, :]
        c0 = s_ref[1 * B:2 * B, :]
        h1 = s_ref[2 * B:3 * B, :]
        c1 = s_ref[3 * B:4 * B, :]
        h2 = s_ref[4 * B:5 * B, :]
        c2 = s_ref[5 * B:6 * B, :]

        def lstm_cell(gates, c):
            act = jax.nn.sigmoid(gates * g_scale) * g_scale + g_shift
            i_g = act[:, 0 * H:1 * H]
            f_g = act[:, 1 * H:2 * H]
            g_g = act[:, 2 * H:3 * H]
            o_g = act[:, 3 * H:4 * H]
            c_new = f_g * c + i_g * g_g
            h_new = o_g * jnp.tanh(c_new)
            return h_new, c_new

        # ---- wavefront recurrence: layer l handles timestep s - l ------------
        for s in range(T + 2):
            # Carries as seen at the *start* of this iteration; h0/h1 double as
            # the streaming inputs of layers 1/2 (their previous-layer output).
            h0_bf = h0.astype(jnp.bfloat16)
            h1_bf = h1.astype(jnp.bfloat16)
            h2_bf = h2.astype(jnp.bfloat16)

            if s < T:                                   # layer 0, timestep s
                g0 = xw0_scr[s * B:(s + 1) * B, :] + jnp.dot(
                    h0_bf, whh0, preferred_element_type=jnp.float32)
                h0, c0 = lstm_cell(g0, c0)

            if 1 <= s <= T:                             # layer 1, timestep s-1
                g1 = (jnp.dot(h0_bf, wih1,
                              preferred_element_type=jnp.float32) + b1
                      + jnp.dot(h1_bf, whh1,
                                preferred_element_type=jnp.float32))
                h1, c1 = lstm_cell(g1, c1)

            if 2 <= s <= T + 1:                         # layer 2, timestep s-2
                g2 = (jnp.dot(h1_bf, wih2,
                              preferred_element_type=jnp.float32) + b2
                      + jnp.dot(h2_bf, whh2,
                                preferred_element_type=jnp.float32))
                h2, c2 = lstm_cell(g2, c2)
                row = (s - 2) * B
                h2_scr[row:row + B, :] = h2

        # ---- folded affine head (LockedDropout == identity in eval) ----------
        out_ref[...] = (jnp.dot(h2_scr[...], wh_ref[...],
                                preferred_element_type=jnp.float32)
                        + bh_ref[...]).astype(out_ref.dtype)

    return kernel


def model_forward(params, x, init_states):
    """x: (T, B, inp_size) time-major. Returns (T*B, n_classes) flat logits."""
    T, B, I = x.shape
    wih0, whh0, b0 = params["lstm0"]
    wih1, whh1, b1 = params["lstm1"]
    wih2, whh2, b2 = params["lstm2"]
    H = whh0.shape[0]
    # Kernel specialization: all three layers share hidden width (true here,
    # hidden_size == linear_size).
    assert whh1.shape[0] == H and whh2.shape[0] == H
    C = params["proj_w"].shape[1]
    N = T * B

    # --- packed kernel inputs (6 DMAs instead of 19) --------------------------
    x_flat = x.reshape(N, I).astype(jnp.bfloat16)
    w_all = jnp.concatenate([wih0, whh0, wih1, whh1, wih2, whh2],
                            axis=0).astype(jnp.bfloat16)       # (I+5H, 4H)
    b_all = jnp.concatenate([b0, b1, b2], axis=0)              # (3, 4H) f32

    (h00, c00), (h01, c01), (h02, c02) = init_states
    s_all = jnp.concatenate([h00, c00, h01, c01, h02, c02], axis=0)  # (6B, H)

    # Fold the affine head: projection(linear(h)) with nothing in between
    # (LockedDropout is identity in eval mode).
    w_head = jnp.dot(params["linear_w"], params["proj_w"])            # (H, C)
    b_head = jnp.dot(params["linear_b"], params["proj_w"]) + params["proj_b"]

    inputs = (x_flat, w_all, b_all, s_all, w_head, b_head)
    kernel = _make_fused_kernel(T, B, I, H)

    return pl.pallas_call(
        kernel,
        out_shape=jax.ShapeDtypeStruct((N, C), jnp.float32),
        in_specs=[_full_spec(a.shape) for a in inputs],
        out_specs=_full_spec((N, C)),
        scratch_shapes=[
            pltpu.VMEM((N, 4 * H), jnp.float32),   # hoisted x@Wih0 + b0 slab
            pltpu.VMEM((N, H), jnp.float32),       # layer-2 output slab
        ],
    )(*inputs)


# --------------------------- parameter construction ---------------------------

def init_params(key, inp_size, linear_size, hidden_size, n_classes):
    """Deterministic parameter init mirroring the module's __init__."""
    ks = jax.random.split(key, 16)
    w_bound = 1.0 / (hidden_size ** 0.5)
    params = {}

    layer_dims = [(inp_size, hidden_size),
                  (hidden_size, hidden_size),
                  (hidden_size, linear_size)]
    for li, (in_d, out_d) in enumerate(layer_dims):
        # stored pre-transposed: (in_d, 4*out_d) and (out_d, 4*out_d),
        # gate-column order [i | f | g | o] as in nn.LSTM.
        wih = jax.random.uniform(ks[2 * li], (in_d, 4 * out_d),
                                 minval=-w_bound, maxval=w_bound,
                                 dtype=jnp.float32)
        whh = jax.random.uniform(ks[2 * li + 1], (out_d, 4 * out_d),
                                 minval=-w_bound, maxval=w_bound,
                                 dtype=jnp.float32)
        # nn.init.constant(0.0) for both b_ih and b_hh → combined bias = 0.
        bias = jnp.zeros((1, 4 * out_d), jnp.float32)
        params[f"lstm{li}"] = (wih, whh, bias)

    lin_bound = 1.0 / (linear_size ** 0.5)
    params["linear_w"] = jax.random.uniform(
        ks[6], (linear_size, linear_size),
        minval=-lin_bound, maxval=lin_bound, dtype=jnp.float32)
    params["linear_b"] = jax.random.uniform(
        ks[7], (1, linear_size),
        minval=-lin_bound, maxval=lin_bound, dtype=jnp.float32)

    params["proj_w"] = jax.random.uniform(
        ks[8], (linear_size, n_classes),
        minval=-0.1, maxval=0.1, dtype=jnp.float32)   # uniform(-0.1, 0.1)
    params["proj_b"] = jnp.zeros((1, n_classes), jnp.float32)
    return params


# ----------------------------------- main -------------------------------------

if __name__ == "__main__":
    # Small shapes consistent with the module (hidden_size == linear_size).
    T, B = 8, 8
    inp_size, hidden_size, linear_size, n_classes = 16, 32, 32, 16

    key = jax.random.PRNGKey(0)
    k_param, k_x = jax.random.split(key)

    params = init_params(k_param, inp_size, linear_size, hidden_size, n_classes)
    x = jax.random.normal(k_x, (T, B, inp_size), dtype=jnp.float32)

    # init_all(...): zero (h0, c0) per layer; layers 0,1 hidden_size, layer 2 linear_size.
    init_states = [
        (jnp.zeros((B, hidden_size), jnp.float32),
         jnp.zeros((B, hidden_size), jnp.float32)),
        (jnp.zeros((B, hidden_size), jnp.float32),
         jnp.zeros((B, hidden_size), jnp.float32)),
        (jnp.zeros((B, linear_size), jnp.float32),
         jnp.zeros((B, linear_size), jnp.float32)),
    ]

    out = model_forward(params, x, init_states)
    jax.block_until_ready(out)
    assert out.shape == (T * B, n_classes), out.shape
    print("KERNEL_OK")
</pallas_src>

<mosaic_0001>
module attributes {stable_mosaic.version = 11 : i64} {
  func.func @kernel(%arg0: memref<64x16xbf16, #tpu.memory_space<vmem>>, %arg1: memref<176x128xbf16, #tpu.memory_space<vmem>>, %arg2: memref<3x128xf32, #tpu.memory_space<vmem>>, %arg3: memref<48x32xf32, #tpu.memory_space<vmem>>, %arg4: memref<32x16xf32, #tpu.memory_space<vmem>>, %arg5: memref<1x16xf32, #tpu.memory_space<vmem>>, %arg6: memref<64x16xf32, #tpu.memory_space<vmem>>, %arg7: memref<64x128xf32, #tpu.memory_space<vmem>>, %arg8: memref<64x32xf32, #tpu.memory_space<vmem>>) attributes {dimension_semantics = [], scalar_prefetch = 0 : i64, scratch_operands = 2 : i64, tpu.core_type = #tpu.core_type<tc>} {
    %0 = tpu.iota {dimensions = array<i32: 1>} : vector<8x128xi32>
    %c64_i32 = arith.constant 64 : i32
    %1 = vector.broadcast %c64_i32 : i32 to vector<8x128xi32>
    %2 = arith.cmpi sge, %0, %1 : vector<8x128xi32>
    %c96_i32 = arith.constant 96 : i32
    %3 = vector.broadcast %c96_i32 : i32 to vector<8x128xi32>
    %4 = arith.cmpi slt, %0, %3 : vector<8x128xi32>
    %5 = arith.andi %2, %4 : vector<8x128xi1>
    %cst = arith.constant 2.000000e+00 : f32
    %cst_0 = arith.constant 1.000000e+00 : f32
    %6 = vector.broadcast %cst : f32 to vector<8x128xf32>
    %7 = vector.broadcast %cst_0 : f32 to vector<8x128xf32>
    %8 = arith.select %5, %6, %7 : vector<8x128xi1>, vector<8x128xf32>
    %cst_1 = arith.constant -1.000000e+00 : f32
    %cst_2 = arith.constant 0.000000e+00 : f32
    %9 = vector.broadcast %cst_1 : f32 to vector<8x128xf32>
    %10 = vector.broadcast %cst_2 : f32 to vector<8x128xf32>
    %11 = arith.select %5, %9, %10 : vector<8x128xi1>, vector<8x128xf32>
    %c0 = arith.constant 0 : index
    %c0_3 = arith.constant 0 : index
    %12 = vector.load %arg1[%c0, %c0_3] : memref<176x128xbf16, #tpu.memory_space<vmem>>, vector<16x128xbf16>
    %c16 = arith.constant 16 : index
    %c0_4 = arith.constant 0 : index
    %13 = vector.load %arg1[%c16, %c0_4] : memref<176x128xbf16, #tpu.memory_space<vmem>>, vector<32x128xbf16>
    %c48 = arith.constant 48 : index
    %c0_5 = arith.constant 0 : index
    %14 = vector.load %arg1[%c48, %c0_5] : memref<176x128xbf16, #tpu.memory_space<vmem>>, vector<32x128xbf16>
    %c80 = arith.constant 80 : index
    %c0_6 = arith.constant 0 : index
    %15 = vector.load %arg1[%c80, %c0_6] : memref<176x128xbf16, #tpu.memory_space<vmem>>, vector<32x128xbf16>
    %c112 = arith.constant 112 : index
    %c0_7 = arith.constant 0 : index
    %16 = vector.load %arg1[%c112, %c0_7] : memref<176x128xbf16, #tpu.memory_space<vmem>>, vector<32x128xbf16>
    %c144 = arith.constant 144 : index
    %c0_8 = arith.constant 0 : index
    %17 = vector.load %arg1[%c144, %c0_8] : memref<176x128xbf16, #tpu.memory_space<vmem>>, vector<32x128xbf16>
    %c1 = arith.constant 1 : index
    %c0_9 = arith.constant 0 : index
    %18 = vector.load %arg2[%c1, %c0_9] : memref<3x128xf32, #tpu.memory_space<vmem>>, vector<1x128xf32>
    %19 = vector.shape_cast %18 : vector<1x128xf32> to vector<1x128xf32>
    %20 = vector.broadcast %19 : vector<1x128xf32> to vector<8x128xf32>
    %c2 = arith.constant 2 : index
    %c0_10 = arith.constant 0 : index
    %21 = vector.load %arg2[%c2, %c0_10] : memref<3x128xf32, #tpu.memory_space<vmem>>, vector<1x128xf32>
    %22 = vector.shape_cast %21 : vector<1x128xf32> to vector<1x128xf32>
    %23 = vector.broadcast %22 : vector<1x128xf32> to vector<8x128xf32>
    %c0_11 = arith.constant 0 : index
    %c0_12 = arith.constant 0 : index
    %24 = vector.load %arg0[%c0_11, %c0_12] : memref<64x16xbf16, #tpu.memory_space<vmem>>, vector<64x16xbf16>
    %cst_13 = arith.constant dense<0.000000e+00> : vector<64x128xf32>
    %25 = tpu.matmul %24, %12, %cst_13 {dimension_numbers = #tpu.dot_dimension_numbers<[1], [0], [0], [1], [0, 0, 1, 1], [], []>} : vector<64x16xbf16>, vector<16x128xbf16>, vector<64x128xf32> -> vector<64x128xf32>
    %c0_14 = arith.constant 0 : index
    %c0_15 = arith.constant 0 : index
    %26 = vector.load %arg2[%c0_14, %c0_15] : memref<3x128xf32, #tpu.memory_space<vmem>>, vector<1x128xf32>
    %27 = vector.broadcast %26 : vector<1x128xf32> to vector<64x128xf32>
    %28 = arith.addf %25, %27 : vector<64x128xf32>
    %c0_16 = arith.constant 0 : index
    %c0_17 = arith.constant 0 : index
    %29 = vector.load %arg7[%c0_16, %c0_17] : memref<64x128xf32, #tpu.memory_space<vmem>>, vector<64x128xf32>
    tpu.vector_store %arg7[%c0_16, %c0_17], %28 {strides = array<i32>} : memref<64x128xf32, #tpu.memory_space<vmem>>, vector<64x128xf32>,
    %c0_18 = arith.constant 0 : index
    %c0_19 = arith.constant 0 : index
    %30 = vector.load %arg3[%c0_18, %c0_19] : memref<48x32xf32, #tpu.memory_space<vmem>>, vector<8x32xf32>
    %c8 = arith.constant 8 : index
    %c0_20 = arith.constant 0 : index
    %31 = vector.load %arg3[%c8, %c0_20] : memref<48x32xf32, #tpu.memory_space<vmem>>, vector<8x32xf32>
    %c16_21 = arith.constant 16 : index
    %c0_22 = arith.constant 0 : index
    %32 = vector.load %arg3[%c16_21, %c0_22] : memref<48x32xf32, #tpu.memory_space<vmem>>, vector<8x32xf32>
    %c24 = arith.constant 24 : index
    %c0_23 = arith.constant 0 : index
    %33 = vector.load %arg3[%c24, %c0_23] : memref<48x32xf32, #tpu.memory_space<vmem>>, vector<8x32xf32>
    %c32 = arith.constant 32 : index
    %c0_24 = arith.constant 0 : index
    %34 = vector.load %arg3[%c32, %c0_24] : memref<48x32xf32, #tpu.memory_space<vmem>>, vector<8x32xf32>
    %c40 = arith.constant 40 : index
    %c0_25 = arith.constant 0 : index
    %35 = vector.load %arg3[%c40, %c0_25] : memref<48x32xf32, #tpu.memory_space<vmem>>, vector<8x32xf32>
    %36 = arith.truncf %30 : vector<8x32xf32> to vector<8x32xbf16>
    %c0_26 = arith.constant 0 : index
    %c0_27 = arith.constant 0 : index
    %37 = vector.load %arg7[%c0_26, %c0_27] : memref<64x128xf32, #tpu.memory_space<vmem>>, vector<8x128xf32>
    %cst_28 = arith.constant dense<0.000000e+00> : vector<8x128xf32>
    %38 = tpu.matmul %36, %13, %cst_28 {dimension_numbers = #tpu.dot_dimension_numbers<[1], [0], [0], [1], [0, 0, 1, 1], [], []>} : vector<8x32xbf16>, vector<32x128xbf16>, vector<8x128xf32> -> vector<8x128xf32>
    %39 = arith.addf %37, %38 : vector<8x128xf32>
    %40 = arith.mulf %39, %8 : vector<8x128xf32>
    %41 = arith.negf %40 : vector<8x128xf32>
    %42 = math.exp %41 : vector<8x128xf32>
    %cst_29 = arith.constant 1.000000e+00 : f32
    %43 = vector.broadcast %cst_29 : f32 to vector<8x128xf32>
    %44 = arith.addf %43, %42 : vector<8x128xf32>
    %45 = arith.divf %43, %44 : vector<8x128xf32>
    %46 = arith.mulf %45, %8 : vector<8x128xf32>
    %47 = arith.addf %46, %11 : vector<8x128xf32>
    %48 = vector.extract_strided_slice %47 {offsets = [0, 0], sizes = [8, 32], strides = [1, 1]} : vector<8x128xf32> to vector<8x32xf32>
    %49 = vector.extract_strided_slice %47 {offsets = [0, 32], sizes = [8, 32], strides = [1, 1]} : vector<8x128xf32> to vector<8x32xf32>
    %50 = vector.extract_strided_slice %47 {offsets = [0, 64], sizes = [8, 32], strides = [1, 1]} : vector<8x128xf32> to vector<8x32xf32>
    %51 = vector.extract_strided_slice %47 {offsets = [0, 96], sizes = [8, 32], strides = [1, 1]} : vector<8x128xf32> to vector<8x32xf32>
    %52 = arith.mulf %49, %31 : vector<8x32xf32>
    %53 = arith.mulf %48, %50 : vector<8x32xf32>
    %54 = arith.addf %52, %53 : vector<8x32xf32>
    %55 = math.tanh %54 : vector<8x32xf32>
    %56 = arith.mulf %51, %55 : vector<8x32xf32>
    %57 = arith.truncf %56 : vector<8x32xf32> to vector<8x32xbf16>
    %58 = arith.truncf %32 : vector<8x32xf32> to vector<8x32xbf16>
    %c8_30 = arith.constant 8 : index
    %c0_31 = arith.constant 0 : index
    %59 = vector.load %arg7[%c8_30, %c0_31] : memref<64x128xf32, #tpu.memory_space<vmem>>, vector<8x128xf32>
    %cst_32 = arith.constant dense<0.000000e+00> : vector<8x128xf32>
    %60 = tpu.matmul %57, %13, %cst_32 {dimension_numbers = #tpu.dot_dimension_numbers<[1], [0], [0], [1], [0, 0, 1, 1], [], []>} : vector<8x32xbf16>, vector<32x128xbf16>, vector<8x128xf32> -> vector<8x128xf32>
    %61 = arith.addf %59, %60 : vector<8x128xf32>
    %62 = arith.mulf %61, %8 : vector<8x128xf32>
    %63 = arith.negf %62 : vector<8x128xf32>
    %64 = math.exp %63 : vector<8x128xf32>
    %cst_33 = arith.constant 1.000000e+00 : f32
    %65 = vector.broadcast %cst_33 : f32 to vector<8x128xf32>
    %66 = arith.addf %65, %64 : vector<8x128xf32>
    %67 = arith.divf %65, %66 : vector<8x128xf32>
    %68 = arith.mulf %67, %8 : vector<8x128xf32>
    %69 = arith.addf %68, %11 : vector<8x128xf32>
    %70 = vector.extract_strided_slice %69 {offsets = [0, 0], sizes = [8, 32], strides = [1, 1]} : vector<8x128xf32> to vector<8x32xf32>
    %71 = vector.extract_strided_slice %69 {offsets = [0, 32], sizes = [8, 32], strides = [1, 1]} : vector<8x128xf32> to vector<8x32xf32>
    %72 = vector.extract_strided_slice %69 {offsets = [0, 64], sizes = [8, 32], strides = [1, 1]} : vector<8x128xf32> to vector<8x32xf32>
    %73 = vector.extract_strided_slice %69 {offsets = [0, 96], sizes = [8, 32], strides = [1, 1]} : vector<8x128xf32> to vector<8x32xf32>
    %74 = arith.mulf %71, %54 : vector<8x32xf32>
    %75 = arith.mulf %70, %72 : vector<8x32xf32>
    %76 = arith.addf %74, %75 : vector<8x32xf32>
    %77 = math.tanh %76 : vector<8x32xf32>
    %78 = arith.mulf %73, %77 : vector<8x32xf32>
    %cst_34 = arith.constant dense<0.000000e+00> : vector<8x128xf32>
    %79 = tpu.matmul %57, %14, %cst_34 {dimension_numbers = #tpu.dot_dimension_numbers<[1], [0], [0], [1], [0, 0, 1, 1], [], []>} : vector<8x32xbf16>, vector<32x128xbf16>, vector<8x128xf32> -> vector<8x128xf32>
    %80 = arith.addf %79, %20 : vector<8x128xf32>
    %cst_35 = arith.constant dense<0.000000e+00> : vector<8x128xf32>
    %81 = tpu.matmul %58, %15, %cst_35 {dimension_numbers = #tpu.dot_dimension_numbers<[1], [0], [0], [1], [0, 0, 1, 1], [], []>} : vector<8x32xbf16>, vector<32x128xbf16>, vector<8x128xf32> -> vector<8x128xf32>
    %82 = arith.addf %80, %81 : vector<8x128xf32>
    %83 = arith.mulf %82, %8 : vector<8x128xf32>
    %84 = arith.negf %83 : vector<8x128xf32>
    %85 = math.exp %84 : vector<8x128xf32>
    %cst_36 = arith.constant 1.000000e+00 : f32
    %86 = vector.broadcast %cst_36 : f32 to vector<8x128xf32>
    %87 = arith.addf %86, %85 : vector<8x128xf32>
    %88 = arith.divf %86, %87 : vector<8x128xf32>
    %89 = arith.mulf %88, %8 : vector<8x128xf32>
    %90 = arith.addf %89, %11 : vector<8x128xf32>
    %91 = vector.extract_strided_slice %90 {offsets = [0, 0], sizes = [8, 32], strides = [1, 1]} : vector<8x128xf32> to vector<8x32xf32>
    %92 = vector.extract_strided_slice %90 {offsets = [0, 32], sizes = [8, 32], strides = [1, 1]} : vector<8x128xf32> to vector<8x32xf32>
    %93 = vector.extract_strided_slice %90 {offsets = [0, 64], sizes = [8, 32], strides = [1, 1]} : vector<8x128xf32> to vector<8x32xf32>
    %94 = vector.extract_strided_slice %90 {offsets = [0, 96], sizes = [8, 32], strides = [1, 1]} : vector<8x128xf32> to vector<8x32xf32>
    %95 = arith.mulf %92, %33 : vector<8x32xf32>
    %96 = arith.mulf %91, %93 : vector<8x32xf32>
    %97 = arith.addf %95, %96 : vector<8x32xf32>
    %98 = math.tanh %97 : vector<8x32xf32>
    %99 = arith.mulf %94, %98 : vector<8x32xf32>
    %100 = arith.truncf %78 : vector<8x32xf32> to vector<8x32xbf16>
    %101 = arith.truncf %99 : vector<8x32xf32> to vector<8x32xbf16>
    %102 = arith.truncf %34 : vector<8x32xf32> to vector<8x32xbf16>
    %c16_37 = arith.constant 16 : index
    %c0_38 = arith.constant 0 : index
    %103 = vector.load %arg7[%c16_37, %c0_38] : memref<64x128xf32, #tpu.memory_space<vmem>>, vector<8x128xf32>
    %cst_39 = arith.constant dense<0.000000e+00> : vector<8x128xf32>
    %104 = tpu.matmul %100, %13, %cst_39 {dimension_numbers = #tpu.dot_dimension_numbers<[1], [0], [0], [1], [0, 0, 1, 1], [], []>} : vector<8x32xbf16>, vector<32x128xbf16>, vector<8x128xf32> -> vector<8x128xf32>
    %105 = arith.addf %103, %104 : vector<8x128xf32>
    %106 = arith.mulf %105, %8 : vector<8x128xf32>
    %107 = arith.negf %106 : vector<8x128xf32>
    %108 = math.exp %107 : vector<8x128xf32>
    %cst_40 = arith.constant 1.000000e+00 : f32
    %109 = vector.broadcast %cst_40 : f32 to vector<8x128xf32>
    %110 = arith.addf %109, %108 : vector<8x128xf32>
    %111 = arith.divf %109, %110 : vector<8x128xf32>
    %112 = arith.mulf %111, %8 : vector<8x128xf32>
    %113 = arith.addf %112, %11 : vector<8x128xf32>
    %114 = vector.extract_strided_slice %113 {offsets = [0, 0], sizes = [8, 32], strides = [1, 1]} : vector<8x128xf32> to vector<8x32xf32>
    %115 = vector.extract_strided_slice %113 {offsets = [0, 32], sizes = [8, 32], strides = [1, 1]} : vector<8x128xf32> to vector<8x32xf32>
    %116 = vector.extract_strided_slice %113 {offsets = [0, 64], sizes = [8, 32], strides = [1, 1]} : vector<8x128xf32> to vector<8x32xf32>
    %117 = vector.extract_strided_slice %113 {offsets = [0, 96], sizes = [8, 32], strides = [1, 1]} : vector<8x128xf32> to vector<8x32xf32>
    %118 = arith.mulf %115, %76 : vector<8x32xf32>
    %119 = arith.mulf %114, %116 : vector<8x32xf32>
    %120 = arith.addf %118, %119 : vector<8x32xf32>
    %121 = math.tanh %120 : vector<8x32xf32>
    %122 = arith.mulf %117, %121 : vector<8x32xf32>
    %cst_41 = arith.constant dense<0.000000e+00> : vector<8x128xf32>
    %123 = tpu.matmul %100, %14, %cst_41 {dimension_numbers = #tpu.dot_dimension_numbers<[1], [0], [0], [1], [0, 0, 1, 1], [], []>} : vector<8x32xbf16>, vector<32x128xbf16>, vector<8x128xf32> -> vector<8x128xf32>
    %124 = arith.addf %123, %20 : vector<8x128xf32>
    %cst_42 = arith.constant dense<0.000000e+00> : vector<8x128xf32>
    %125 = tpu.matmul %101, %15, %cst_42 {dimension_numbers = #tpu.dot_dimension_numbers<[1], [0], [0], [1], [0, 0, 1, 1], [], []>} : vector<8x32xbf16>, vector<32x128xbf16>, vector<8x128xf32> -> vector<8x128xf32>
    %126 = arith.addf %124, %125 : vector<8x128xf32>
    %127 = arith.mulf %126, %8 : vector<8x128xf32>
    %128 = arith.negf %127 : vector<8x128xf32>
    %129 = math.exp %128 : vector<8x128xf32>
    %cst_43 = arith.constant 1.000000e+00 : f32
    %130 = vector.broadcast %cst_43 : f32 to vector<8x128xf32>
    %131 = arith.addf %130, %129 : vector<8x128xf32>
    %132 = arith.divf %130, %131 : vector<8x128xf32>
    %133 = arith.mulf %132, %8 : vector<8x128xf32>
    %134 = arith.addf %133, %11 : vector<8x128xf32>
    %135 = vector.extract_strided_slice %134 {offsets = [0, 0], sizes = [8, 32], strides = [1, 1]} : vector<8x128xf32> to vector<8x32xf32>
    %136 = vector.extract_strided_slice %134 {offsets = [0, 32], sizes = [8, 32], strides = [1, 1]} : vector<8x128xf32> to vector<8x32xf32>
    %137 = vector.extract_strided_slice %134 {offsets = [0, 64], sizes = [8, 32], strides = [1, 1]} : vector<8x128xf32> to vector<8x32xf32>
    %138 = vector.extract_strided_slice %134 {offsets = [0, 96], sizes = [8, 32], strides = [1, 1]} : vector<8x128xf32> to vector<8x32xf32>
    %139 = arith.mulf %136, %97 : vector<8x32xf32>
    %140 = arith.mulf %135, %137 : vector<8x32xf32>
    %141 = arith.addf %139, %140 : vector<8x32xf32>
    %142 = math.tanh %141 : vector<8x32xf32>
    %143 = arith.mulf %138, %142 : vector<8x32xf32>
    %cst_44 = arith.constant dense<0.000000e+00> : vector<8x128xf32>
    %144 = tpu.matmul %101, %16, %cst_44 {dimension_numbers = #tpu.dot_dimension_numbers<[1], [0], [0], [1], [0, 0, 1, 1], [], []>} : vector<8x32xbf16>, vector<32x128xbf16>, vector<8x128xf32> -> vector<8x128xf32>
    %145 = arith.addf %144, %23 : vector<8x128xf32>
    %cst_45 = arith.constant dense<0.000000e+00> : vector<8x128xf32>
    %146 = tpu.matmul %102, %17, %cst_45 {dimension_numbers = #tpu.dot_dimension_numbers<[1], [0], [0], [1], [0, 0, 1, 1], [], []>} : vector<8x32xbf16>, vector<32x128xbf16>, vector<8x128xf32> -> vector<8x128xf32>
    %147 = arith.addf %145, %146 : vector<8x128xf32>
    %148 = arith.mulf %147, %8 : vector<8x128xf32>
    %149 = arith.negf %148 : vector<8x128xf32>
    %150 = math.exp %149 : vector<8x128xf32>
    %cst_46 = arith.constant 1.000000e+00 : f32
    %151 = vector.broadcast %cst_46 : f32 to vector<8x128xf32>
    %152 = arith.addf %151, %150 : vector<8x128xf32>
    %153 = arith.divf %151, %152 : vector<8x128xf32>
    %154 = arith.mulf %153, %8 : vector<8x128xf32>
    %155 = arith.addf %154, %11 : vector<8x128xf32>
    %156 = vector.extract_strided_slice %155 {offsets = [0, 0], sizes = [8, 32], strides = [1, 1]} : vector<8x128xf32> to vector<8x32xf32>
    %157 = vector.extract_strided_slice %155 {offsets = [0, 32], sizes = [8, 32], strides = [1, 1]} : vector<8x128xf32> to vector<8x32xf32>
    %158 = vector.extract_strided_slice %155 {offsets = [0, 64], sizes = [8, 32], strides = [1, 1]} : vector<8x128xf32> to vector<8x32xf32>
    %159 = vector.extract_strided_slice %155 {offsets = [0, 96], sizes = [8, 32], strides = [1, 1]} : vector<8x128xf32> to vector<8x32xf32>
    %160 = arith.mulf %157, %35 : vector<8x32xf32>
    %161 = arith.mulf %156, %158 : vector<8x32xf32>
    %162 = arith.addf %160, %161 : vector<8x32xf32>
    %163 = math.tanh %162 : vector<8x32xf32>
    %164 = arith.mulf %159, %163 : vector<8x32xf32>
    %c0_47 = arith.constant 0 : index
    %c0_48 = arith.constant 0 : index
    %165 = vector.load %arg8[%c0_47, %c0_48] : memref<64x32xf32, #tpu.memory_space<vmem>>, vector<8x32xf32>
    tpu.vector_store %arg8[%c0_47, %c0_48], %164 {strides = array<i32>} : memref<64x32xf32, #tpu.memory_space<vmem>>, vector<8x32xf32>,
    %166 = arith.truncf %122 : vector<8x32xf32> to vector<8x32xbf16>
    %167 = arith.truncf %143 : vector<8x32xf32> to vector<8x32xbf16>
    %168 = arith.truncf %164 : vector<8x32xf32> to vector<8x32xbf16>
    %c24_49 = arith.constant 24 : index
    %c0_50 = arith.constant 0 : index
    %169 = vector.load %arg7[%c24_49, %c0_50] : memref<64x128xf32, #tpu.memory_space<vmem>>, vector<8x128xf32>
    %cst_51 = arith.constant dense<0.000000e+00> : vector<8x128xf32>
    %170 = tpu.matmul %166, %13, %cst_51 {dimension_numbers = #tpu.dot_dimension_numbers<[1], [0], [0], [1], [0, 0, 1, 1], [], []>} : vector<8x32xbf16>, vector<32x128xbf16>, vector<8x128xf32> -> vector<8x128xf32>
    %171 = arith.addf %169, %170 : vector<8x128xf32>
    %172 = arith.mulf %171, %8 : vector<8x128xf32>
    %173 = arith.negf %172 : vector<8x128xf32>
    %174 = math.exp %173 : vector<8x128xf32>
    %cst_52 = arith.constant 1.000000e+00 : f32
    %175 = vector.broadcast %cst_52 : f32 to vector<8x128xf32>
    %176 = arith.addf %175, %174 : vector<8x128xf32>
    %177 = arith.divf %175, %176 : vector<8x128xf32>
    %178 = arith.mulf %177, %8 : vector<8x128xf32>
    %179 = arith.addf %178, %11 : vector<8x128xf32>
    %180 = vector.extract_strided_slice %179 {offsets = [0, 0], sizes = [8, 32], strides = [1, 1]} : vector<8x128xf32> to vector<8x32xf32>
    %181 = vector.extract_strided_slice %179 {offsets = [0, 32], sizes = [8, 32], strides = [1, 1]} : vector<8x128xf32> to vector<8x32xf32>
    %182 = vector.extract_strided_slice %179 {offsets = [0, 64], sizes = [8, 32], strides = [1, 1]} : vector<8x128xf32> to vector<8x32xf32>
    %183 = vector.extract_strided_slice %179 {offsets = [0, 96], sizes = [8, 32], strides = [1, 1]} : vector<8x128xf32> to vector<8x32xf32>
    %184 = arith.mulf %181, %120 : vector<8x32xf32>
    %185 = arith.mulf %180, %182 : vector<8x32xf32>
    %186 = arith.addf %184, %185 : vector<8x32xf32>
    %187 = math.tanh %186 : vector<8x32xf32>
    %188 = arith.mulf %183, %187 : vector<8x32xf32>
    %cst_53 = arith.constant dense<0.000000e+00> : vector<8x128xf32>
    %189 = tpu.matmul %166, %14, %cst_53 {dimension_numbers = #tpu.dot_dimension_numbers<[1], [0], [0], [1], [0, 0, 1, 1], [], []>} : vector<8x32xbf16>, vector<32x128xbf16>, vector<8x128xf32> -> vector<8x128xf32>
    %190 = arith.addf %189, %20 : vector<8x128xf32>
    %cst_54 = arith.constant dense<0.000000e+00> : vector<8x128xf32>
    %191 = tpu.matmul %167, %15, %cst_54 {dimension_numbers = #tpu.dot_dimension_numbers<[1], [0], [0], [1], [0, 0, 1, 1], [], []>} : vector<8x32xbf16>, vector<32x128xbf16>, vector<8x128xf32> -> vector<8x128xf32>
    %192 = arith.addf %190, %191 : vector<8x128xf32>
    %193 = arith.mulf %192, %8 : vector<8x128xf32>
    %194 = arith.negf %193 : vector<8x128xf32>
    %195 = math.exp %194 : vector<8x128xf32>
    %cst_55 = arith.constant 1.000000e+00 : f32
    %196 = vector.broadcast %cst_55 : f32 to vector<8x128xf32>
    %197 = arith.addf %196, %195 : vector<8x128xf32>
    %198 = arith.divf %196, %197 : vector<8x128xf32>
    %199 = arith.mulf %198, %8 : vector<8x128xf32>
    %200 = arith.addf %199, %11 : vector<8x128xf32>
    %201 = vector.extract_strided_slice %200 {offsets = [0, 0], sizes = [8, 32], strides = [1, 1]} : vector<8x128xf32> to vector<8x32xf32>
    %202 = vector.extract_strided_slice %200 {offsets = [0, 32], sizes = [8, 32], strides = [1, 1]} : vector<8x128xf32> to vector<8x32xf32>
    %203 = vector.extract_strided_slice %200 {offsets = [0, 64], sizes = [8, 32], strides = [1, 1]} : vector<8x128xf32> to vector<8x32xf32>
    %204 = vector.extract_strided_slice %200 {offsets = [0, 96], sizes = [8, 32], strides = [1, 1]} : vector<8x128xf32> to vector<8x32xf32>
    %205 = arith.mulf %202, %141 : vector<8x32xf32>
    %206 = arith.mulf %201, %203 : vector<8x32xf32>
    %207 = arith.addf %205, %206 : vector<8x32xf32>
    %208 = math.tanh %207 : vector<8x32xf32>
    %209 = arith.mulf %204, %208 : vector<8x32xf32>
    %cst_56 = arith.constant dense<0.000000e+00> : vector<8x128xf32>
    %210 = tpu.matmul %167, %16, %cst_56 {dimension_numbers = #tpu.dot_dimension_numbers<[1], [0], [0], [1], [0, 0, 1, 1], [], []>} : vector<8x32xbf16>, vector<32x128xbf16>, vector<8x128xf32> -> vector<8x128xf32>
    %211 = arith.addf %210, %23 : vector<8x128xf32>
    %cst_57 = arith.constant dense<0.000000e+00> : vector<8x128xf32>
    %212 = tpu.matmul %168, %17, %cst_57 {dimension_numbers = #tpu.dot_dimension_numbers<[1], [0], [0], [1], [0, 0, 1, 1], [], []>} : vector<8x32xbf16>, vector<32x128xbf16>, vector<8x128xf32> -> vector<8x128xf32>
    %213 = arith.addf %211, %212 : vector<8x128xf32>
    %214 = arith.mulf %213, %8 : vector<8x128xf32>
    %215 = arith.negf %214 : vector<8x128xf32>
    %216 = math.exp %215 : vector<8x128xf32>
    %cst_58 = arith.constant 1.000000e+00 : f32
    %217 = vector.broadcast %cst_58 : f32 to vector<8x128xf32>
    %218 = arith.addf %217, %216 : vector<8x128xf32>
    %219 = arith.divf %217, %218 : vector<8x128xf32>
    %220 = arith.mulf %219, %8 : vector<8x128xf32>
    %221 = arith.addf %220, %11 : vector<8x128xf32>
    %222 = vector.extract_strided_slice %221 {offsets = [0, 0], sizes = [8, 32], strides = [1, 1]} : vector<8x128xf32> to vector<8x32xf32>
    %223 = vector.extract_strided_slice %221 {offsets = [0, 32], sizes = [8, 32], strides = [1, 1]} : vector<8x128xf32> to vector<8x32xf32>
    %224 = vector.extract_strided_slice %221 {offsets = [0, 64], sizes = [8, 32], strides = [1, 1]} : vector<8x128xf32> to vector<8x32xf32>
    %225 = vector.extract_strided_slice %221 {offsets = [0, 96], sizes = [8, 32], strides = [1, 1]} : vector<8x128xf32> to vector<8x32xf32>
    %226 = arith.mulf %223, %162 : vector<8x32xf32>
    %227 = arith.mulf %222, %224 : vector<8x32xf32>
    %228 = arith.addf %226, %227 : vector<8x32xf32>
    %229 = math.tanh %228 : vector<8x32xf32>
    %230 = arith.mulf %225, %229 : vector<8x32xf32>
    %c8_59 = arith.constant 8 : index
    %c0_60 = arith.constant 0 : index
    %231 = vector.load %arg8[%c8_59, %c0_60] : memref<64x32xf32, #tpu.memory_space<vmem>>, vector<8x32xf32>
    tpu.vector_store %arg8[%c8_59, %c0_60], %230 {strides = array<i32>} : memref<64x32xf32, #tpu.memory_space<vmem>>, vector<8x32xf32>,
    %232 = arith.truncf %188 : vector<8x32xf32> to vector<8x32xbf16>
    %233 = arith.truncf %209 : vector<8x32xf32> to vector<8x32xbf16>
    %234 = arith.truncf %230 : vector<8x32xf32> to vector<8x32xbf16>
    %c32_61 = arith.constant 32 : index
    %c0_62 = arith.constant 0 : index
    %235 = vector.load %arg7[%c32_61, %c0_62] : memref<64x128xf32, #tpu.memory_space<vmem>>, vector<8x128xf32>
    %cst_63 = arith.constant dense<0.000000e+00> : vector<8x128xf32>
    %236 = tpu.matmul %232, %13, %cst_63 {dimension_numbers = #tpu.dot_dimension_numbers<[1], [0], [0], [1], [0, 0, 1, 1], [], []>} : vector<8x32xbf16>, vector<32x128xbf16>, vector<8x128xf32> -> vector<8x128xf32>
    %237 = arith.addf %235, %236 : vector<8x128xf32>
    %238 = arith.mulf %237, %8 : vector<8x128xf32>
    %239 = arith.negf %238 : vector<8x128xf32>
    %240 = math.exp %239 : vector<8x128xf32>
    %cst_64 = arith.constant 1.000000e+00 : f32
    %241 = vector.broadcast %cst_64 : f32 to vector<8x128xf32>
    %242 = arith.addf %241, %240 : vector<8x128xf32>
    %243 = arith.divf %241, %242 : vector<8x128xf32>
    %244 = arith.mulf %243, %8 : vector<8x128xf32>
    %245 = arith.addf %244, %11 : vector<8x128xf32>
    %246 = vector.extract_strided_slice %245 {offsets = [0, 0], sizes = [8, 32], strides = [1, 1]} : vector<8x128xf32> to vector<8x32xf32>
    %247 = vector.extract_strided_slice %245 {offsets = [0, 32], sizes = [8, 32], strides = [1, 1]} : vector<8x128xf32> to vector<8x32xf32>
    %248 = vector.extract_strided_slice %245 {offsets = [0, 64], sizes = [8, 32], strides = [1, 1]} : vector<8x128xf32> to vector<8x32xf32>
    %249 = vector.extract_strided_slice %245 {offsets = [0, 96], sizes = [8, 32], strides = [1, 1]} : vector<8x128xf32> to vector<8x32xf32>
    %250 = arith.mulf %247, %186 : vector<8x32xf32>
    %251 = arith.mulf %246, %248 : vector<8x32xf32>
    %252 = arith.addf %250, %251 : vector<8x32xf32>
    %253 = math.tanh %252 : vector<8x32xf32>
    %254 = arith.mulf %249, %253 : vector<8x32xf32>
    %cst_65 = arith.constant dense<0.000000e+00> : vector<8x128xf32>
    %255 = tpu.matmul %232, %14, %cst_65 {dimension_numbers = #tpu.dot_dimension_numbers<[1], [0], [0], [1], [0, 0, 1, 1], [], []>} : vector<8x32xbf16>, vector<32x128xbf16>, vector<8x128xf32> -> vector<8x128xf32>
    %256 = arith.addf %255, %20 : vector<8x128xf32>
    %cst_66 = arith.constant dense<0.000000e+00> : vector<8x128xf32>
    %257 = tpu.matmul %233, %15, %cst_66 {dimension_numbers = #tpu.dot_dimension_numbers<[1], [0], [0], [1], [0, 0, 1, 1], [], []>} : vector<8x32xbf16>, vector<32x128xbf16>, vector<8x128xf32> -> vector<8x128xf32>
    %258 = arith.addf %256, %257 : vector<8x128xf32>
    %259 = arith.mulf %258, %8 : vector<8x128xf32>
    %260 = arith.negf %259 : vector<8x128xf32>
    %261 = math.exp %260 : vector<8x128xf32>
    %cst_67 = arith.constant 1.000000e+00 : f32
    %262 = vector.broadcast %cst_67 : f32 to vector<8x128xf32>
    %263 = arith.addf %262, %261 : vector<8x128xf32>
    %264 = arith.divf %262, %263 : vector<8x128xf32>
    %265 = arith.mulf %264, %8 : vector<8x128xf32>
    %266 = arith.addf %265, %11 : vector<8x128xf32>
    %267 = vector.extract_strided_slice %266 {offsets = [0, 0], sizes = [8, 32], strides = [1, 1]} : vector<8x128xf32> to vector<8x32xf32>
    %268 = vector.extract_strided_slice %266 {offsets = [0, 32], sizes = [8, 32], strides = [1, 1]} : vector<8x128xf32> to vector<8x32xf32>
    %269 = vector.extract_strided_slice %266 {offsets = [0, 64], sizes = [8, 32], strides = [1, 1]} : vector<8x128xf32> to vector<8x32xf32>
    %270 = vector.extract_strided_slice %266 {offsets = [0, 96], sizes = [8, 32], strides = [1, 1]} : vector<8x128xf32> to vector<8x32xf32>
    %271 = arith.mulf %268, %207 : vector<8x32xf32>
    %272 = arith.mulf %267, %269 : vector<8x32xf32>
    %273 = arith.addf %271, %272 : vector<8x32xf32>
    %274 = math.tanh %273 : vector<8x32xf32>
    %275 = arith.mulf %270, %274 : vector<8x32xf32>
    %cst_68 = arith.constant dense<0.000000e+00> : vector<8x128xf32>
    %276 = tpu.matmul %233, %16, %cst_68 {dimension_numbers = #tpu.dot_dimension_numbers<[1], [0], [0], [1], [0, 0, 1, 1], [], []>} : vector<8x32xbf16>, vector<32x128xbf16>, vector<8x128xf32> -> vector<8x128xf32>
    %277 = arith.addf %276, %23 : vector<8x128xf32>
    %cst_69 = arith.constant dense<0.000000e+00> : vector<8x128xf32>
    %278 = tpu.matmul %234, %17, %cst_69 {dimension_numbers = #tpu.dot_dimension_numbers<[1], [0], [0], [1], [0, 0, 1, 1], [], []>} : vector<8x32xbf16>, vector<32x128xbf16>, vector<8x128xf32> -> vector<8x128xf32>
    %279 = arith.addf %277, %278 : vector<8x128xf32>
    %280 = arith.mulf %279, %8 : vector<8x128xf32>
    %281 = arith.negf %280 : vector<8x128xf32>
    %282 = math.exp %281 : vector<8x128xf32>
    %cst_70 = arith.constant 1.000000e+00 : f32
    %283 = vector.broadcast %cst_70 : f32 to vector<8x128xf32>
    %284 = arith.addf %283, %282 : vector<8x128xf32>
    %285 = arith.divf %283, %284 : vector<8x128xf32>
    %286 = arith.mulf %285, %8 : vector<8x128xf32>
    %287 = arith.addf %286, %11 : vector<8x128xf32>
    %288 = vector.extract_strided_slice %287 {offsets = [0, 0], sizes = [8, 32], strides = [1, 1]} : vector<8x128xf32> to vector<8x32xf32>
    %289 = vector.extract_strided_slice %287 {offsets = [0, 32], sizes = [8, 32], strides = [1, 1]} : vector<8x128xf32> to vector<8x32xf32>
    %290 = vector.extract_strided_slice %287 {offsets = [0, 64], sizes = [8, 32], strides = [1, 1]} : vector<8x128xf32> to vector<8x32xf32>
    %291 = vector.extract_strided_slice %287 {offsets = [0, 96], sizes = [8, 32], strides = [1, 1]} : vector<8x128xf32> to vector<8x32xf32>
    %292 = arith.mulf %289, %228 : vector<8x32xf32>
    %293 = arith.mulf %288, %290 : vector<8x32xf32>
    %294 = arith.addf %292, %293 : vector<8x32xf32>
    %295 = math.tanh %294 : vector<8x32xf32>
    %296 = arith.mulf %291, %295 : vector<8x32xf32>
    %c16_71 = arith.constant 16 : index
    %c0_72 = arith.constant 0 : index
    %297 = vector.load %arg8[%c16_71, %c0_72] : memref<64x32xf32, #tpu.memory_space<vmem>>, vector<8x32xf32>
    tpu.vector_store %arg8[%c16_71, %c0_72], %296 {strides = array<i32>} : memref<64x32xf32, #tpu.memory_space<vmem>>, vector<8x32xf32>,
    %298 = arith.truncf %254 : vector<8x32xf32> to vector<8x32xbf16>
    %299 = arith.truncf %275 : vector<8x32xf32> to vector<8x32xbf16>
    %300 = arith.truncf %296 : vector<8x32xf32> to vector<8x32xbf16>
    %c40_73 = arith.constant 40 : index
    %c0_74 = arith.constant 0 : index
    %301 = vector.load %arg7[%c40_73, %c0_74] : memref<64x128xf32, #tpu.memory_space<vmem>>, vector<8x128xf32>
    %cst_75 = arith.constant dense<0.000000e+00> : vector<8x128xf32>
    %302 = tpu.matmul %298, %13, %cst_75 {dimension_numbers = #tpu.dot_dimension_numbers<[1], [0], [0], [1], [0, 0, 1, 1], [], []>} : vector<8x32xbf16>, vector<32x128xbf16>, vector<8x128xf32> -> vector<8x128xf32>
    %303 = arith.addf %301, %302 : vector<8x128xf32>
    %304 = arith.mulf %303, %8 : vector<8x128xf32>
    %305 = arith.negf %304 : vector<8x128xf32>
    %306 = math.exp %305 : vector<8x128xf32>
    %cst_76 = arith.constant 1.000000e+00 : f32
    %307 = vector.broadcast %cst_76 : f32 to vector<8x128xf32>
    %308 = arith.addf %307, %306 : vector<8x128xf32>
    %309 = arith.divf %307, %308 : vector<8x128xf32>
    %310 = arith.mulf %309, %8 : vector<8x128xf32>
    %311 = arith.addf %310, %11 : vector<8x128xf32>
    %312 = vector.extract_strided_slice %311 {offsets = [0, 0], sizes = [8, 32], strides = [1, 1]} : vector<8x128xf32> to vector<8x32xf32>
    %313 = vector.extract_strided_slice %311 {offsets = [0, 32], sizes = [8, 32], strides = [1, 1]} : vector<8x128xf32> to vector<8x32xf32>
    %314 = vector.extract_strided_slice %311 {offsets = [0, 64], sizes = [8, 32], strides = [1, 1]} : vector<8x128xf32> to vector<8x32xf32>
    %315 = vector.extract_strided_slice %311 {offsets = [0, 96], sizes = [8, 32], strides = [1, 1]} : vector<8x128xf32> to vector<8x32xf32>
    %316 = arith.mulf %313, %252 : vector<8x32xf32>
    %317 = arith.mulf %312, %314 : vector<8x32xf32>
    %318 = arith.addf %316, %317 : vector<8x32xf32>
    %319 = math.tanh %318 : vector<8x32xf32>
    %320 = arith.mulf %315, %319 : vector<8x32xf32>
    %cst_77 = arith.constant dense<0.000000e+00> : vector<8x128xf32>
    %321 = tpu.matmul %298, %14, %cst_77 {dimension_numbers = #tpu.dot_dimension_numbers<[1], [0], [0], [1], [0, 0, 1, 1], [], []>} : vector<8x32xbf16>, vector<32x128xbf16>, vector<8x128xf32> -> vector<8x128xf32>
    %322 = arith.addf %321, %20 : vector<8x128xf32>
    %cst_78 = arith.constant dense<0.000000e+00> : vector<8x128xf32>
    %323 = tpu.matmul %299, %15, %cst_78 {dimension_numbers = #tpu.dot_dimension_numbers<[1], [0], [0], [1], [0, 0, 1, 1], [], []>} : vector<8x32xbf16>, vector<32x128xbf16>, vector<8x128xf32> -> vector<8x128xf32>
    %324 = arith.addf %322, %323 : vector<8x128xf32>
    %325 = arith.mulf %324, %8 : vector<8x128xf32>
    %326 = arith.negf %325 : vector<8x128xf32>
    %327 = math.exp %326 : vector<8x128xf32>
    %cst_79 = arith.constant 1.000000e+00 : f32
    %328 = vector.broadcast %cst_79 : f32 to vector<8x128xf32>
    %329 = arith.addf %328, %327 : vector<8x128xf32>
    %330 = arith.divf %328, %329 : vector<8x128xf32>
    %331 = arith.mulf %330, %8 : vector<8x128xf32>
    %332 = arith.addf %331, %11 : vector<8x128xf32>
    %333 = vector.extract_strided_slice %332 {offsets = [0, 0], sizes = [8, 32], strides = [1, 1]} : vector<8x128xf32> to vector<8x32xf32>
    %334 = vector.extract_strided_slice %332 {offsets = [0, 32], sizes = [8, 32], strides = [1, 1]} : vector<8x128xf32> to vector<8x32xf32>
    %335 = vector.extract_strided_slice %332 {offsets = [0, 64], sizes = [8, 32], strides = [1, 1]} : vector<8x128xf32> to vector<8x32xf32>
    %336 = vector.extract_strided_slice %332 {offsets = [0, 96], sizes = [8, 32], strides = [1, 1]} : vector<8x128xf32> to vector<8x32xf32>
    %337 = arith.mulf %334, %273 : vector<8x32xf32>
    %338 = arith.mulf %333, %335 : vector<8x32xf32>
    %339 = arith.addf %337, %338 : vector<8x32xf32>
    %340 = math.tanh %339 : vector<8x32xf32>
    %341 = arith.mulf %336, %340 : vector<8x32xf32>
    %cst_80 = arith.constant dense<0.000000e+00> : vector<8x128xf32>
    %342 = tpu.matmul %299, %16, %cst_80 {dimension_numbers = #tpu.dot_dimension_numbers<[1], [0], [0], [1], [0, 0, 1, 1], [], []>} : vector<8x32xbf16>, vector<32x128xbf16>, vector<8x128xf32> -> vector<8x128xf32>
    %343 = arith.addf %342, %23 : vector<8x128xf32>
    %cst_81 = arith.constant dense<0.000000e+00> : vector<8x128xf32>
    %344 = tpu.matmul %300, %17, %cst_81 {dimension_numbers = #tpu.dot_dimension_numbers<[1], [0], [0], [1], [0, 0, 1, 1], [], []>} : vector<8x32xbf16>, vector<32x128xbf16>, vector<8x128xf32> -> vector<8x128xf32>
    %345 = arith.addf %343, %344 : vector<8x128xf32>
    %346 = arith.mulf %345, %8 : vector<8x128xf32>
    %347 = arith.negf %346 : vector<8x128xf32>
    %348 = math.exp %347 : vector<8x128xf32>
    %cst_82 = arith.constant 1.000000e+00 : f32
    %349 = vector.broadcast %cst_82 : f32 to vector<8x128xf32>
    %350 = arith.addf %349, %348 : vector<8x128xf32>
    %351 = arith.divf %349, %350 : vector<8x128xf32>
    %352 = arith.mulf %351, %8 : vector<8x128xf32>
    %353 = arith.addf %352, %11 : vector<8x128xf32>
    %354 = vector.extract_strided_slice %353 {offsets = [0, 0], sizes = [8, 32], strides = [1, 1]} : vector<8x128xf32> to vector<8x32xf32>
    %355 = vector.extract_strided_slice %353 {offsets = [0, 32], sizes = [8, 32], strides = [1, 1]} : vector<8x128xf32> to vector<8x32xf32>
    %356 = vector.extract_strided_slice %353 {offsets = [0, 64], sizes = [8, 32], strides = [1, 1]} : vector<8x128xf32> to vector<8x32xf32>
    %357 = vector.extract_strided_slice %353 {offsets = [0, 96], sizes = [8, 32], strides = [1, 1]} : vector<8x128xf32> to vector<8x32xf32>
    %358 = arith.mulf %355, %294 : vector<8x32xf32>
    %359 = arith.mulf %354, %356 : vector<8x32xf32>
    %360 = arith.addf %358, %359 : vector<8x32xf32>
    %361 = math.tanh %360 : vector<8x32xf32>
    %362 = arith.mulf %357, %361 : vector<8x32xf32>
    %c24_83 = arith.constant 24 : index
    %c0_84 = arith.constant 0 : index
    %363 = vector.load %arg8[%c24_83, %c0_84] : memref<64x32xf32, #tpu.memory_space<vmem>>, vector<8x32xf32>
    tpu.vector_store %arg8[%c24_83, %c0_84], %362 {strides = array<i32>} : memref<64x32xf32, #tpu.memory_space<vmem>>, vector<8x32xf32>,
    %364 = arith.truncf %320 : vector<8x32xf32> to vector<8x32xbf16>
    %365 = arith.truncf %341 : vector<8x32xf32> to vector<8x32xbf16>
    %366 = arith.truncf %362 : vector<8x32xf32> to vector<8x32xbf16>
    %c48_85 = arith.constant 48 : index
    %c0_86 = arith.constant 0 : index
    %367 = vector.load %arg7[%c48_85, %c0_86] : memref<64x128xf32, #tpu.memory_space<vmem>>, vector<8x128xf32>
    %cst_87 = arith.constant dense<0.000000e+00> : vector<8x128xf32>
    %368 = tpu.matmul %364, %13, %cst_87 {dimension_numbers = #tpu.dot_dimension_numbers<[1], [0], [0], [1], [0, 0, 1, 1], [], []>} : vector<8x32xbf16>, vector<32x128xbf16>, vector<8x128xf32> -> vector<8x128xf32>
    %369 = arith.addf %367, %368 : vector<8x128xf32>
    %370 = arith.mulf %369, %8 : vector<8x128xf32>
    %371 = arith.negf %370 : vector<8x128xf32>
    %372 = math.exp %371 : vector<8x128xf32>
    %cst_88 = arith.constant 1.000000e+00 : f32
    %373 = vector.broadcast %cst_88 : f32 to vector<8x128xf32>
    %374 = arith.addf %373, %372 : vector<8x128xf32>
    %375 = arith.divf %373, %374 : vector<8x128xf32>
    %376 = arith.mulf %375, %8 : vector<8x128xf32>
    %377 = arith.addf %376, %11 : vector<8x128xf32>
    %378 = vector.extract_strided_slice %377 {offsets = [0, 0], sizes = [8, 32], strides = [1, 1]} : vector<8x128xf32> to vector<8x32xf32>
    %379 = vector.extract_strided_slice %377 {offsets = [0, 32], sizes = [8, 32], strides = [1, 1]} : vector<8x128xf32> to vector<8x32xf32>
    %380 = vector.extract_strided_slice %377 {offsets = [0, 64], sizes = [8, 32], strides = [1, 1]} : vector<8x128xf32> to vector<8x32xf32>
    %381 = vector.extract_strided_slice %377 {offsets = [0, 96], sizes = [8, 32], strides = [1, 1]} : vector<8x128xf32> to vector<8x32xf32>
    %382 = arith.mulf %379, %318 : vector<8x32xf32>
    %383 = arith.mulf %378, %380 : vector<8x32xf32>
    %384 = arith.addf %382, %383 : vector<8x32xf32>
    %385 = math.tanh %384 : vector<8x32xf32>
    %386 = arith.mulf %381, %385 : vector<8x32xf32>
    %cst_89 = arith.constant dense<0.000000e+00> : vector<8x128xf32>
    %387 = tpu.matmul %364, %14, %cst_89 {dimension_numbers = #tpu.dot_dimension_numbers<[1], [0], [0], [1], [0, 0, 1, 1], [], []>} : vector<8x32xbf16>, vector<32x128xbf16>, vector<8x128xf32> -> vector<8x128xf32>
    %388 = arith.addf %387, %20 : vector<8x128xf32>
    %cst_90 = arith.constant dense<0.000000e+00> : vector<8x128xf32>
    %389 = tpu.matmul %365, %15, %cst_90 {dimension_numbers = #tpu.dot_dimension_numbers<[1], [0], [0], [1], [0, 0, 1, 1], [], []>} : vector<8x32xbf16>, vector<32x128xbf16>, vector<8x128xf32> -> vector<8x128xf32>
    %390 = arith.addf %388, %389 : vector<8x128xf32>
    %391 = arith.mulf %390, %8 : vector<8x128xf32>
    %392 = arith.negf %391 : vector<8x128xf32>
    %393 = math.exp %392 : vector<8x128xf32>
    %cst_91 = arith.constant 1.000000e+00 : f32
    %394 = vector.broadcast %cst_91 : f32 to vector<8x128xf32>
    %395 = arith.addf %394, %393 : vector<8x128xf32>
    %396 = arith.divf %394, %395 : vector<8x128xf32>
    %397 = arith.mulf %396, %8 : vector<8x128xf32>
    %398 = arith.addf %397, %11 : vector<8x128xf32>
    %399 = vector.extract_strided_slice %398 {offsets = [0, 0], sizes = [8, 32], strides = [1, 1]} : vector<8x128xf32> to vector<8x32xf32>
    %400 = vector.extract_strided_slice %398 {offsets = [0, 32], sizes = [8, 32], strides = [1, 1]} : vector<8x128xf32> to vector<8x32xf32>
    %401 = vector.extract_strided_slice %398 {offsets = [0, 64], sizes = [8, 32], strides = [1, 1]} : vector<8x128xf32> to vector<8x32xf32>
    %402 = vector.extract_strided_slice %398 {offsets = [0, 96], sizes = [8, 32], strides = [1, 1]} : vector<8x128xf32> to vector<8x32xf32>
    %403 = arith.mulf %400, %339 : vector<8x32xf32>
    %404 = arith.mulf %399, %401 : vector<8x32xf32>
    %405 = arith.addf %403, %404 : vector<8x32xf32>
    %406 = math.tanh %405 : vector<8x32xf32>
    %407 = arith.mulf %402, %406 : vector<8x32xf32>
    %cst_92 = arith.constant dense<0.000000e+00> : vector<8x128xf32>
    %408 = tpu.matmul %365, %16, %cst_92 {dimension_numbers = #tpu.dot_dimension_numbers<[1], [0], [0], [1], [0, 0, 1, 1], [], []>} : vector<8x32xbf16>, vector<32x128xbf16>, vector<8x128xf32> -> vector<8x128xf32>
    %409 = arith.addf %408, %23 : vector<8x128xf32>
    %cst_93 = arith.constant dense<0.000000e+00> : vector<8x128xf32>
    %410 = tpu.matmul %366, %17, %cst_93 {dimension_numbers = #tpu.dot_dimension_numbers<[1], [0], [0], [1], [0, 0, 1, 1], [], []>} : vector<8x32xbf16>, vector<32x128xbf16>, vector<8x128xf32> -> vector<8x128xf32>
    %411 = arith.addf %409, %410 : vector<8x128xf32>
    %412 = arith.mulf %411, %8 : vector<8x128xf32>
    %413 = arith.negf %412 : vector<8x128xf32>
    %414 = math.exp %413 : vector<8x128xf32>
    %cst_94 = arith.constant 1.000000e+00 : f32
    %415 = vector.broadcast %cst_94 : f32 to vector<8x128xf32>
    %416 = arith.addf %415, %414 : vector<8x128xf32>
    %417 = arith.divf %415, %416 : vector<8x128xf32>
    %418 = arith.mulf %417, %8 : vector<8x128xf32>
    %419 = arith.addf %418, %11 : vector<8x128xf32>
    %420 = vector.extract_strided_slice %419 {offsets = [0, 0], sizes = [8, 32], strides = [1, 1]} : vector<8x128xf32> to vector<8x32xf32>
    %421 = vector.extract_strided_slice %419 {offsets = [0, 32], sizes = [8, 32], strides = [1, 1]} : vector<8x128xf32> to vector<8x32xf32>
    %422 = vector.extract_strided_slice %419 {offsets = [0, 64], sizes = [8, 32], strides = [1, 1]} : vector<8x128xf32> to vector<8x32xf32>
    %423 = vector.extract_strided_slice %419 {offsets = [0, 96], sizes = [8, 32], strides = [1, 1]} : vector<8x128xf32> to vector<8x32xf32>
    %424 = arith.mulf %421, %360 : vector<8x32xf32>
    %425 = arith.mulf %420, %422 : vector<8x32xf32>
    %426 = arith.addf %424, %425 : vector<8x32xf32>
    %427 = math.tanh %426 : vector<8x32xf32>
    %428 = arith.mulf %423, %427 : vector<8x32xf32>
    %c32_95 = arith.constant 32 : index
    %c0_96 = arith.constant 0 : index
    %429 = vector.load %arg8[%c32_95, %c0_96] : memref<64x32xf32, #tpu.memory_space<vmem>>, vector<8x32xf32>
    tpu.vector_store %arg8[%c32_95, %c0_96], %428 {strides = array<i32>} : memref<64x32xf32, #tpu.memory_space<vmem>>, vector<8x32xf32>,
    %430 = arith.truncf %386 : vector<8x32xf32> to vector<8x32xbf16>
    %431 = arith.truncf %407 : vector<8x32xf32> to vector<8x32xbf16>
    %432 = arith.truncf %428 : vector<8x32xf32> to vector<8x32xbf16>
    %c56 = arith.constant 56 : index
    %c0_97 = arith.constant 0 : index
    %433 = vector.load %arg7[%c56, %c0_97] : memref<64x128xf32, #tpu.memory_space<vmem>>, vector<8x128xf32>
    %cst_98 = arith.constant dense<0.000000e+00> : vector<8x128xf32>
    %434 = tpu.matmul %430, %13, %cst_98 {dimension_numbers = #tpu.dot_dimension_numbers<[1], [0], [0], [1], [0, 0, 1, 1], [], []>} : vector<8x32xbf16>, vector<32x128xbf16>, vector<8x128xf32> -> vector<8x128xf32>
    %435 = arith.addf %433, %434 : vector<8x128xf32>
    %436 = arith.mulf %435, %8 : vector<8x128xf32>
    %437 = arith.negf %436 : vector<8x128xf32>
    %438 = math.exp %437 : vector<8x128xf32>
    %cst_99 = arith.constant 1.000000e+00 : f32
    %439 = vector.broadcast %cst_99 : f32 to vector<8x128xf32>
    %440 = arith.addf %439, %438 : vector<8x128xf32>
    %441 = arith.divf %439, %440 : vector<8x128xf32>
    %442 = arith.mulf %441, %8 : vector<8x128xf32>
    %443 = arith.addf %442, %11 : vector<8x128xf32>
    %444 = vector.extract_strided_slice %443 {offsets = [0, 0], sizes = [8, 32], strides = [1, 1]} : vector<8x128xf32> to vector<8x32xf32>
    %445 = vector.extract_strided_slice %443 {offsets = [0, 32], sizes = [8, 32], strides = [1, 1]} : vector<8x128xf32> to vector<8x32xf32>
    %446 = vector.extract_strided_slice %443 {offsets = [0, 64], sizes = [8, 32], strides = [1, 1]} : vector<8x128xf32> to vector<8x32xf32>
    %447 = vector.extract_strided_slice %443 {offsets = [0, 96], sizes = [8, 32], strides = [1, 1]} : vector<8x128xf32> to vector<8x32xf32>
    %448 = arith.mulf %445, %384 : vector<8x32xf32>
    %449 = arith.mulf %444, %446 : vector<8x32xf32>
    %450 = arith.addf %448, %449 : vector<8x32xf32>
    %451 = math.tanh %450 : vector<8x32xf32>
    %452 = arith.mulf %447, %451 : vector<8x32xf32>
    %cst_100 = arith.constant dense<0.000000e+00> : vector<8x128xf32>
    %453 = tpu.matmul %430, %14, %cst_100 {dimension_numbers = #tpu.dot_dimension_numbers<[1], [0], [0], [1], [0, 0, 1, 1], [], []>} : vector<8x32xbf16>, vector<32x128xbf16>, vector<8x128xf32> -> vector<8x128xf32>
    %454 = arith.addf %453, %20 : vector<8x128xf32>
    %cst_101 = arith.constant dense<0.000000e+00> : vector<8x128xf32>
    %455 = tpu.matmul %431, %15, %cst_101 {dimension_numbers = #tpu.dot_dimension_numbers<[1], [0], [0], [1], [0, 0, 1, 1], [], []>} : vector<8x32xbf16>, vector<32x128xbf16>, vector<8x128xf32> -> vector<8x128xf32>
    %456 = arith.addf %454, %455 : vector<8x128xf32>
    %457 = arith.mulf %456, %8 : vector<8x128xf32>
    %458 = arith.negf %457 : vector<8x128xf32>
    %459 = math.exp %458 : vector<8x128xf32>
    %cst_102 = arith.constant 1.000000e+00 : f32
    %460 = vector.broadcast %cst_102 : f32 to vector<8x128xf32>
    %461 = arith.addf %460, %459 : vector<8x128xf32>
    %462 = arith.divf %460, %461 : vector<8x128xf32>
    %463 = arith.mulf %462, %8 : vector<8x128xf32>
    %464 = arith.addf %463, %11 : vector<8x128xf32>
    %465 = vector.extract_strided_slice %464 {offsets = [0, 0], sizes = [8, 32], strides = [1, 1]} : vector<8x128xf32> to vector<8x32xf32>
    %466 = vector.extract_strided_slice %464 {offsets = [0, 32], sizes = [8, 32], strides = [1, 1]} : vector<8x128xf32> to vector<8x32xf32>
    %467 = vector.extract_strided_slice %464 {offsets = [0, 64], sizes = [8, 32], strides = [1, 1]} : vector<8x128xf32> to vector<8x32xf32>
    %468 = vector.extract_strided_slice %464 {offsets = [0, 96], sizes = [8, 32], strides = [1, 1]} : vector<8x128xf32> to vector<8x32xf32>
    %469 = arith.mulf %466, %405 : vector<8x32xf32>
    %470 = arith.mulf %465, %467 : vector<8x32xf32>
    %471 = arith.addf %469, %470 : vector<8x32xf32>
    %472 = math.tanh %471 : vector<8x32xf32>
    %473 = arith.mulf %468, %472 : vector<8x32xf32>
    %cst_103 = arith.constant dense<0.000000e+00> : vector<8x128xf32>
    %474 = tpu.matmul %431, %16, %cst_103 {dimension_numbers = #tpu.dot_dimension_numbers<[1], [0], [0], [1], [0, 0, 1, 1], [], []>} : vector<8x32xbf16>, vector<32x128xbf16>, vector<8x128xf32> -> vector<8x128xf32>
    %475 = arith.addf %474, %23 : vector<8x128xf32>
    %cst_104 = arith.constant dense<0.000000e+00> : vector<8x128xf32>
    %476 = tpu.matmul %432, %17, %cst_104 {dimension_numbers = #tpu.dot_dimension_numbers<[1], [0], [0], [1], [0, 0, 1, 1], [], []>} : vector<8x32xbf16>, vector<32x128xbf16>, vector<8x128xf32> -> vector<8x128xf32>
    %477 = arith.addf %475, %476 : vector<8x128xf32>
    %478 = arith.mulf %477, %8 : vector<8x128xf32>
    %479 = arith.negf %478 : vector<8x128xf32>
    %480 = math.exp %479 : vector<8x128xf32>
    %cst_105 = arith.constant 1.000000e+00 : f32
    %481 = vector.broadcast %cst_105 : f32 to vector<8x128xf32>
    %482 = arith.addf %481, %480 : vector<8x128xf32>
    %483 = arith.divf %481, %482 : vector<8x128xf32>
    %484 = arith.mulf %483, %8 : vector<8x128xf32>
    %485 = arith.addf %484, %11 : vector<8x128xf32>
    %486 = vector.extract_strided_slice %485 {offsets = [0, 0], sizes = [8, 32], strides = [1, 1]} : vector<8x128xf32> to vector<8x32xf32>
    %487 = vector.extract_strided_slice %485 {offsets = [0, 32], sizes = [8, 32], strides = [1, 1]} : vector<8x128xf32> to vector<8x32xf32>
    %488 = vector.extract_strided_slice %485 {offsets = [0, 64], sizes = [8, 32], strides = [1, 1]} : vector<8x128xf32> to vector<8x32xf32>
    %489 = vector.extract_strided_slice %485 {offsets = [0, 96], sizes = [8, 32], strides = [1, 1]} : vector<8x128xf32> to vector<8x32xf32>
    %490 = arith.mulf %487, %426 : vector<8x32xf32>
    %491 = arith.mulf %486, %488 : vector<8x32xf32>
    %492 = arith.addf %490, %491 : vector<8x32xf32>
    %493 = math.tanh %492 : vector<8x32xf32>
    %494 = arith.mulf %489, %493 : vector<8x32xf32>
    %c40_106 = arith.constant 40 : index
    %c0_107 = arith.constant 0 : index
    %495 = vector.load %arg8[%c40_106, %c0_107] : memref<64x32xf32, #tpu.memory_space<vmem>>, vector<8x32xf32>
    tpu.vector_store %arg8[%c40_106, %c0_107], %494 {strides = array<i32>} : memref<64x32xf32, #tpu.memory_space<vmem>>, vector<8x32xf32>,
    %496 = arith.truncf %452 : vector<8x32xf32> to vector<8x32xbf16>
    %497 = arith.truncf %473 : vector<8x32xf32> to vector<8x32xbf16>
    %498 = arith.truncf %494 : vector<8x32xf32> to vector<8x32xbf16>
    %cst_108 = arith.constant dense<0.000000e+00> : vector<8x128xf32>
    %499 = tpu.matmul %496, %14, %cst_108 {dimension_numbers = #tpu.dot_dimension_numbers<[1], [0], [0], [1], [0, 0, 1, 1], [], []>} : vector<8x32xbf16>, vector<32x128xbf16>, vector<8x128xf32> -> vector<8x128xf32>
    %500 = arith.addf %499, %20 : vector<8x128xf32>
    %cst_109 = arith.constant dense<0.000000e+00> : vector<8x128xf32>
    %501 = tpu.matmul %497, %15, %cst_109 {dimension_numbers = #tpu.dot_dimension_numbers<[1], [0], [0], [1], [0, 0, 1, 1], [], []>} : vector<8x32xbf16>, vector<32x128xbf16>, vector<8x128xf32> -> vector<8x128xf32>
    %502 = arith.addf %500, %501 : vector<8x128xf32>
    %503 = arith.mulf %502, %8 : vector<8x128xf32>
    %504 = arith.negf %503 : vector<8x128xf32>
    %505 = math.exp %504 : vector<8x128xf32>
    %cst_110 = arith.constant 1.000000e+00 : f32
    %506 = vector.broadcast %cst_110 : f32 to vector<8x128xf32>
    %507 = arith.addf %506, %505 : vector<8x128xf32>
    %508 = arith.divf %506, %507 : vector<8x128xf32>
    %509 = arith.mulf %508, %8 : vector<8x128xf32>
    %510 = arith.addf %509, %11 : vector<8x128xf32>
    %511 = vector.extract_strided_slice %510 {offsets = [0, 0], sizes = [8, 32], strides = [1, 1]} : vector<8x128xf32> to vector<8x32xf32>
    %512 = vector.extract_strided_slice %510 {offsets = [0, 32], sizes = [8, 32], strides = [1, 1]} : vector<8x128xf32> to vector<8x32xf32>
    %513 = vector.extract_strided_slice %510 {offsets = [0, 64], sizes = [8, 32], strides = [1, 1]} : vector<8x128xf32> to vector<8x32xf32>
    %514 = vector.extract_strided_slice %510 {offsets = [0, 96], sizes = [8, 32], strides = [1, 1]} : vector<8x128xf32> to vector<8x32xf32>
    %515 = arith.mulf %512, %471 : vector<8x32xf32>
    %516 = arith.mulf %511, %513 : vector<8x32xf32>
    %517 = arith.addf %515, %516 : vector<8x32xf32>
    %518 = math.tanh %517 : vector<8x32xf32>
    %519 = arith.mulf %514, %518 : vector<8x32xf32>
    %cst_111 = arith.constant dense<0.000000e+00> : vector<8x128xf32>
    %520 = tpu.matmul %497, %16, %cst_111 {dimension_numbers = #tpu.dot_dimension_numbers<[1], [0], [0], [1], [0, 0, 1, 1], [], []>} : vector<8x32xbf16>, vector<32x128xbf16>, vector<8x128xf32> -> vector<8x128xf32>
    %521 = arith.addf %520, %23 : vector<8x128xf32>
    %cst_112 = arith.constant dense<0.000000e+00> : vector<8x128xf32>
    %522 = tpu.matmul %498, %17, %cst_112 {dimension_numbers = #tpu.dot_dimension_numbers<[1], [0], [0], [1], [0, 0, 1, 1], [], []>} : vector<8x32xbf16>, vector<32x128xbf16>, vector<8x128xf32> -> vector<8x128xf32>
    %523 = arith.addf %521, %522 : vector<8x128xf32>
    %524 = arith.mulf %523, %8 : vector<8x128xf32>
    %525 = arith.negf %524 : vector<8x128xf32>
    %526 = math.exp %525 : vector<8x128xf32>
    %cst_113 = arith.constant 1.000000e+00 : f32
    %527 = vector.broadcast %cst_113 : f32 to vector<8x128xf32>
    %528 = arith.addf %527, %526 : vector<8x128xf32>
    %529 = arith.divf %527, %528 : vector<8x128xf32>
    %530 = arith.mulf %529, %8 : vector<8x128xf32>
    %531 = arith.addf %530, %11 : vector<8x128xf32>
    %532 = vector.extract_strided_slice %531 {offsets = [0, 0], sizes = [8, 32], strides = [1, 1]} : vector<8x128xf32> to vector<8x32xf32>
    %533 = vector.extract_strided_slice %531 {offsets = [0, 32], sizes = [8, 32], strides = [1, 1]} : vector<8x128xf32> to vector<8x32xf32>
    %534 = vector.extract_strided_slice %531 {offsets = [0, 64], sizes = [8, 32], strides = [1, 1]} : vector<8x128xf32> to vector<8x32xf32>
    %535 = vector.extract_strided_slice %531 {offsets = [0, 96], sizes = [8, 32], strides = [1, 1]} : vector<8x128xf32> to vector<8x32xf32>
    %536 = arith.mulf %533, %492 : vector<8x32xf32>
    %537 = arith.mulf %532, %534 : vector<8x32xf32>
    %538 = arith.addf %536, %537 : vector<8x32xf32>
    %539 = math.tanh %538 : vector<8x32xf32>
    %540 = arith.mulf %535, %539 : vector<8x32xf32>
    %c48_114 = arith.constant 48 : index
    %c0_115 = arith.constant 0 : index
    %541 = vector.load %arg8[%c48_114, %c0_115] : memref<64x32xf32, #tpu.memory_space<vmem>>, vector<8x32xf32>
    tpu.vector_store %arg8[%c48_114, %c0_115], %540 {strides = array<i32>} : memref<64x32xf32, #tpu.memory_space<vmem>>, vector<8x32xf32>,
    %542 = arith.truncf %519 : vector<8x32xf32> to vector<8x32xbf16>
    %543 = arith.truncf %540 : vector<8x32xf32> to vector<8x32xbf16>
    %cst_116 = arith.constant dense<0.000000e+00> : vector<8x128xf32>
    %544 = tpu.matmul %542, %16, %cst_116 {dimension_numbers = #tpu.dot_dimension_numbers<[1], [0], [0], [1], [0, 0, 1, 1], [], []>} : vector<8x32xbf16>, vector<32x128xbf16>, vector<8x128xf32> -> vector<8x128xf32>
    %545 = arith.addf %544, %23 : vector<8x128xf32>
    %cst_117 = arith.constant dense<0.000000e+00> : vector<8x128xf32>
    %546 = tpu.matmul %543, %17, %cst_117 {dimension_numbers = #tpu.dot_dimension_numbers<[1], [0], [0], [1], [0, 0, 1, 1], [], []>} : vector<8x32xbf16>, vector<32x128xbf16>, vector<8x128xf32> -> vector<8x128xf32>
    %547 = arith.addf %545, %546 : vector<8x128xf32>
    %548 = arith.mulf %547, %8 : vector<8x128xf32>
    %549 = arith.negf %548 : vector<8x128xf32>
    %550 = math.exp %549 : vector<8x128xf32>
    %cst_118 = arith.constant 1.000000e+00 : f32
    %551 = vector.broadcast %cst_118 : f32 to vector<8x128xf32>
    %552 = arith.addf %551, %550 : vector<8x128xf32>
    %553 = arith.divf %551, %552 : vector<8x128xf32>
    %554 = arith.mulf %553, %8 : vector<8x128xf32>
    %555 = arith.addf %554, %11 : vector<8x128xf32>
    %556 = vector.extract_strided_slice %555 {offsets = [0, 0], sizes = [8, 32], strides = [1, 1]} : vector<8x128xf32> to vector<8x32xf32>
    %557 = vector.extract_strided_slice %555 {offsets = [0, 32], sizes = [8, 32], strides = [1, 1]} : vector<8x128xf32> to vector<8x32xf32>
    %558 = vector.extract_strided_slice %555 {offsets = [0, 64], sizes = [8, 32], strides = [1, 1]} : vector<8x128xf32> to vector<8x32xf32>
    %559 = vector.extract_strided_slice %555 {offsets = [0, 96], sizes = [8, 32], strides = [1, 1]} : vector<8x128xf32> to vector<8x32xf32>
    %560 = arith.mulf %557, %538 : vector<8x32xf32>
    %561 = arith.mulf %556, %558 : vector<8x32xf32>
    %562 = arith.addf %560, %561 : vector<8x32xf32>
    %563 = math.tanh %562 : vector<8x32xf32>
    %564 = arith.mulf %559, %563 : vector<8x32xf32>
    %c56_119 = arith.constant 56 : index
    %c0_120 = arith.constant 0 : index
    %565 = vector.load %arg8[%c56_119, %c0_120] : memref<64x32xf32, #tpu.memory_space<vmem>>, vector<8x32xf32>
    tpu.vector_store %arg8[%c56_119, %c0_120], %564 {strides = array<i32>} : memref<64x32xf32, #tpu.memory_space<vmem>>, vector<8x32xf32>,
    %c0_121 = arith.constant 0 : index
    %c0_122 = arith.constant 0 : index
    %566 = vector.load %arg8[%c0_121, %c0_122] : memref<64x32xf32, #tpu.memory_space<vmem>>, vector<64x32xf32>
    %c0_123 = arith.constant 0 : index
    %c0_124 = arith.constant 0 : index
    %567 = vector.load %arg4[%c0_123, %c0_124] : memref<32x16xf32, #tpu.memory_space<vmem>>, vector<32x16xf32>
    %cst_125 = arith.constant dense<0.000000e+00> : vector<64x16xf32>
    %568 = tpu.matmul %566, %567, %cst_125 {dimension_numbers = #tpu.dot_dimension_numbers<[1], [0], [0], [1], [0, 0, 1, 1], [], []>} : vector<64x32xf32>, vector<32x16xf32>, vector<64x16xf32> -> vector<64x16xf32>
    %c0_126 = arith.constant 0 : index
    %c0_127 = arith.constant 0 : index
    %569 = vector.load %arg5[%c0_126, %c0_127] : memref<1x16xf32, #tpu.memory_space<vmem>>, vector<1x16xf32>
    %570 = vector.broadcast %569 : vector<1x16xf32> to vector<64x16xf32>
    %571 = arith.addf %568, %570 : vector<64x16xf32>
    %c0_128 = arith.constant 0 : index
    %c0_129 = arith.constant 0 : index
    %572 = vector.load %arg6[%c0_128, %c0_129] : memref<64x16xf32, #tpu.memory_space<vmem>>, vector<64x16xf32>
    tpu.vector_store %arg6[%c0_128, %c0_129], %571 {strides = array<i32>} : memref<64x16xf32, #tpu.memory_space<vmem>>, vector<64x16xf32>,
    return
  }
}

</mosaic_0001>

<llo_original>
// kernel: tpu_custom_call.1
$region0: #{tpu_custom_call.1}
  #allocation0 [shape = 'u32[]', space=smem, size = 0x4, offset = 0x4, fixed_abs, tag = 'smem constant byte address 0x4 - core index']
  #allocation1 [shape = 'u32[72,128]{1,0:T(1,128)}', space=vmem, size = 0x9000, scoped, tag = 'internal scratch']
  #allocation2 [shape = 'f32[64,128]{1,0:T(8,128)}', space=vmem, size = 0x8000, scoped, tag = 'scratch operand']
  #allocation3 [shape = 'f32[64,32]{1,0:T(8,128)}', space=vmem, size = 0x8000, scoped, tag = 'scratch operand']
  %s0 = inlined_call_operand.vmem [shape: bf16[64,16], index: 0, kind: input, shape index: {}]
  %s1 = inlined_call_operand.vmem [shape: bf16[176,128], index: 1, kind: input, shape index: {}]
  %s2 = inlined_call_operand.vmem [shape: f32[3,128], index: 2, kind: input, shape index: {}]
  %s3 = inlined_call_operand.vmem [shape: f32[48,32], index: 3, kind: input, shape index: {}]
  %s4 = inlined_call_operand.vmem [shape: f32[32,16], index: 4, kind: input, shape index: {}]
  %s5 = inlined_call_operand.vmem [shape: f32[1,16], index: 5, kind: input, shape index: {}]
  %s6 = inlined_call_operand.vmem [shape: f32[64,16], index: 6, kind: output, shape index: {}]
  %s7 = sld [smem:[#allocation0]]
  $region34: #{tpu_custom_call.1} parent=0
    _
  %s9 = ssub.s32 1, %s7
  %s10 = scalar_select 0, %s9, %s7
  // Predicated region
  $region2: #{tpu_custom_call.1} parent=0 // pred_check
    _
  $region3: #{tpu_custom_call.1} parent=0 // pred_check_branch
    %12 = sbr.rel (0) target = $region5
  $region4: #{tpu_custom_call.1} parent=0 // pred_region
    _
  $region5: #{tpu_custom_call.1} parent=0 // pred_fallthru
    _
  // Predicated region
  $region6: #{tpu_custom_call.1} parent=0 // pred_check
    _
  $region7: #{tpu_custom_call.1} parent=0 // pred_check_branch
    %14 = sbr.rel (0) target = $region9
  $region8: #{tpu_custom_call.1} parent=0 // pred_region
    _
  $region9: #{tpu_custom_call.1} parent=0 // pred_fallthru
    _
  // Predicated region
  $region10: #{tpu_custom_call.1} parent=0 // pred_check
    _
  $region11: #{tpu_custom_call.1} parent=0 // pred_check_branch
    %16 = sbr.rel (0) target = $region13
  $region12: #{tpu_custom_call.1} parent=0 // pred_region
    _
  $region13: #{tpu_custom_call.1} parent=0 // pred_fallthru
    _
  // Predicated region
  $region14: #{tpu_custom_call.1} parent=0 // pred_check
    _
  $region15: #{tpu_custom_call.1} parent=0 // pred_check_branch
    %18 = sbr.rel (0) target = $region17
  $region16: #{tpu_custom_call.1} parent=0 // pred_region
    _
  $region17: #{tpu_custom_call.1} parent=0 // pred_fallthru
    _
  // Predicated region
  $region18: #{tpu_custom_call.1} parent=0 // pred_check
    _
  $region19: #{tpu_custom_call.1} parent=0 // pred_check_branch
    %20 = sbr.rel (0) target = $region21
  $region20: #{tpu_custom_call.1} parent=0 // pred_region
    _
  $region21: #{tpu_custom_call.1} parent=0 // pred_fallthru
    _
  // Predicated region
  $region22: #{tpu_custom_call.1} parent=0 // pred_check
    _
  $region23: #{tpu_custom_call.1} parent=0 // pred_check_branch
    %22 = sbr.rel (0) target = $region25
  $region24: #{tpu_custom_call.1} parent=0 // pred_region
    _
  $region25: #{tpu_custom_call.1} parent=0 // pred_fallthru
    _
  %v24 = vlaneseq
  %v25 = vand.u32 %v24, 127
  %vm26 = vcmp.ge.s32.totalorder %v25, 64
  %vm27 = vcmp.lt.s32.totalorder %v25, 96
  %vm28 = vmand %vm26, %vm27
  %v29 = vsel %vm28, 2.0, 1.0
  %v30 = vsel %vm28, -1.0, 0.0
  %v31 = vld [vmem:[%s1] sm:$0xf]
  %v32 = vld [vmem:[%s1 + $0x4] sm:$0xf]
  %v33 = vld [vmem:[%s1 + $0x8] sm:$0xf]
  %v34 = vld [vmem:[%s1 + $0xc] sm:$0xf]
  %v35 = vld [vmem:[%s1 + $0x10] sm:$0xf]
  %v36 = vld [vmem:[%s1 + $0x14] sm:$0xf]
  %v37 = vld [vmem:[%s1 + $0x18] sm:$0xf]
  %v38 = vld [vmem:[%s1 + $0x1c] sm:$0xf]
  %v39 = vld [vmem:[%s1 + $0x20] sm:$0xf]
  %v40 = vld [vmem:[%s1 + $0x24] sm:$0xf]
  %v41 = vld [vmem:[%s1 + $0x28] sm:$0xf]
  %v42 = vld [vmem:[%s1 + $0x2c] sm:$0xf]
  %v43 = vld [vmem:[%s1 + $0x30] sm:$0xf]
  %v44 = vld [vmem:[%s1 + $0x34] sm:$0xf]
  %v45 = vld [vmem:[%s1 + $0x38] sm:$0xf]
  %v46 = vld [vmem:[%s1 + $0x3c] sm:$0xf]
  %v47 = vld [vmem:[%s1 + $0x40] sm:$0xf]
  %v48 = vld [vmem:[%s1 + $0x44] sm:$0xf]
  %v49 = vld [vmem:[%s1 + $0x48] sm:$0xf]
  %v50 = vld [vmem:[%s1 + $0x4c] sm:$0xf]
  %v51 = vld [vmem:[%s1 + $0x50] sm:$0xf]
  %v52 = vld [vmem:[%s1 + $0x54] sm:$0xf]
  %v53 = vld [vmem:[%s2 + $0x1] sm:$0x1]
  %v54 = vperm.slane %v53, 0
  %v55 = vld [vmem:[%s2 + $0x2] sm:$0x1]
  %v56 = vperm.slane %v55, 0
  %v57 = vld [vmem:[%s0] sm:$0xf]
  %v58 = vld [vmem:[%s0 + $0x4] sm:$0xf]
  %v59 = vld [vmem:[%s0 + $0x8] sm:$0xf]
  %v60 = vld [vmem:[%s0 + $0xc] sm:$0xf]
  %v61 = vld [vmem:[%s0 + $0x10] sm:$0xf]
  %v62 = vld [vmem:[%s0 + $0x14] sm:$0xf]
  %v63 = vld [vmem:[%s0 + $0x18] sm:$0xf]
  %v64 = vld [vmem:[%s0 + $0x1c] sm:$0xf]
  %v65 = vld [vmem:[%s2] sm:$0x1]
  %v66 = vperm.slane %v65, 0
  %v75 = vunpack.c.l.b16 %v57
  %v76 = vunpack.c.l.b16 %v58
  %v77 = vunpack.c.l.b16 %v59
  %v78 = vunpack.c.l.b16 %v60
  %v79 = vunpack.c.l.b16 %v61
  %v80 = vunpack.c.l.b16 %v62
  %v81 = vunpack.c.l.b16 %v63
  %v82 = vunpack.c.l.b16 %v64
  %v83 = vpack.c.b16 %v76, %v75
  %v84 = vpack.c.b16 %v78, %v77
  %v85 = vpack.c.b16 %v80, %v79
  %v86 = vpack.c.b16 %v82, %v81
  %v89 = vunpack.c.l.b16 %v31
  %v90 = vunpack.c.l.b16 %v32
  %v91 = vpack.c.b16 %v90, %v89
  %vm93 = vcmask 130048
  %v95 = vsel %vm93, %v83, 0
  %v98 = vsel %vm93, %v84, 0
  %v101 = vsel %vm93, %v85, 0
  %v104 = vsel %vm93, %v86, 0
  %106 = vmatpush.bf16.msra.mxu0 0
  %107 = vmatpush.bf16.msra.mxu0 0
  %108 = vmatpush.bf16.msra.mxu0 0
  %109 = vmatpush.bf16.msra.mxu0 0
  %110 = vmatpush.bf16.msra.mxu0 0
  %111 = vmatpush.bf16.msra.mxu0 0
  %112 = vmatpush.bf16.msra.mxu0 0
  %113 = vmatpush.bf16.msra.mxu0 %v91
  %114 = vmatmul.bf16.gmra.mxu0 %v95
  %v115 = vpop.f32.mrf.mxu0
  %v116 = vadd.f32 %v66, %v115
  %v117 = vpop.f32.mrf.mxu0
  %v118 = vadd.f32 %v66, %v117
  %119 = vmatmul.bf16.gmra.mxu0 %v98
  %v120 = vpop.f32.mrf.mxu0
  %v121 = vadd.f32 %v66, %v120
  %v122 = vpop.f32.mrf.mxu0
  %v123 = vadd.f32 %v66, %v122
  %124 = vmatmul.bf16.gmra.mxu0 %v101
  %v125 = vpop.f32.mrf.mxu0
  %v126 = vadd.f32 %v66, %v125
  %v127 = vpop.f32.mrf.mxu0
  %v128 = vadd.f32 %v66, %v127
  %129 = vmatmul.bf16.gmra.mxu0 %v104
  %v130 = vpop.f32.mrf.mxu0
  %v131 = vadd.f32 %v66, %v130
  %v132 = vpop.f32.mrf.mxu0
  %v133 = vadd.f32 %v66, %v132
  %134 = vdwg.mxu0
  %135 = vst [vmem:[#allocation2] sm:$0xff] %v116
  %136 = vst [vmem:[#allocation2 + $0x8] sm:$0xff] %v118
  %137 = vst [vmem:[#allocation2 + $0x10] sm:$0xff] %v121
  %138 = vst [vmem:[#allocation2 + $0x18] sm:$0xff] %v123
  %139 = vst [vmem:[#allocation2 + $0x20] sm:$0xff] %v126
  %140 = vst [vmem:[#allocation2 + $0x28] sm:$0xff] %v128
  %141 = vst [vmem:[#allocation2 + $0x30] sm:$0xff] %v131
  %142 = vst [vmem:[#allocation2 + $0x38] sm:$0xff] %v133
  %v143 = vld [vmem:[%s3] sm:$0xff]
  %v144 = vld [vmem:[%s3 + $0x8] sm:$0xff]
  %v145 = vld [vmem:[%s3 + $0x10] sm:$0xff]
  %v146 = vld [vmem:[%s3 + $0x18] sm:$0xff]
  %v147 = vld [vmem:[%s3 + $0x20] sm:$0xff]
  %v148 = vld [vmem:[%s3 + $0x28] sm:$0xff]
  %v149 = vpack.c.bf16 %v143, %v143
  %v150 = vld [vmem:[#allocation2] sm:$0xff]
  %v155 = vunpack.c.l.b16 %v33
  %v156 = vunpack.c.l.b16 %v34
  %v157 = vunpack.c.l.b16 %v35
  %v158 = vunpack.c.l.b16 %v36
  %v159 = vpack.c.b16 %v156, %v155
  %v160 = vpack.c.b16 %v158, %v157
  %vm163 = vcmask 261120
  %v165 = vsel %vm163, %v149, 0
  %167 = vmatpush.bf16.msra.mxu0 0
  %168 = vmatpush.bf16.msra.mxu0 0
  %169 = vmatpush.bf16.msra.mxu0 0
  %170 = vmatpush.bf16.msra.mxu0 0
  %171 = vmatpush.bf16.msra.mxu0 0
  %172 = vmatpush.bf16.msra.mxu0 0
  %173 = vmatpush.bf16.msra.mxu0 %v160
  %174 = vmatpush.bf16.msra.mxu0 %v159
  %175 = vmatmul.bf16.gmra.mxu0 %v165
  %v176 = vpop.f32.mrf.mxu0
  %v177 = vadd.f32 0.0, %v176
  %v178 = vpop.f32.mrf.mxu0
  %179 = vdwg.mxu0
  %v180 = vadd.f32 %v150, %v177
  %v181 = vmul.f32 %v180, %v29
  %v182 = vxor.u32 %v181, 2147483648
  %v183 = vmul.f32 %v182, 1.442695
  %v184 = vpow.pop %v183
  %v185 = vadd.f32 %v184, 1.0
  %v186 = vrcp.pop %v185
  %v187 = vmul.f32 %v185, %v186
  %v188 = vsub.f32 1.0, %v187
  %v189 = vmul.f32 %v186, %v188
  %v190 = vadd.f32 %v186, %v189
  %vm191 = vweird.f32 %v185
  %vm192 = vweird.f32 %v186
  %vm193 = vmor %vm191, %vm192
  %v194 = vsel %vm193, %v186, %v190
  %v195 = vand.u32 2147483647, %v185
  %vm196 = vcmp.eq.f32.partialorder %v195, 8.507059e+37
  %v197 = vand.u32 %v185, 2147483648
  %v198 = vor.u32 1.1754944e-38, %v197
  %v199 = vsel %vm196, %v198, %v194
  %v200 = vmul.f32 1.0, %v199
  %v201 = vmul.f32 %v200, %v29
  %v202 = vadd.f32 %v201, %v30
  %204 = vrot.lane.b32.xlu0 %v144, 32
  %v205 = vpop.permute.xlu0 %204
  %v207 = vmul.f32 %v202, %v205
  %209 = vrot.lane.b32.xlu0 %v202, 64
  %v210 = vpop.permute.xlu0 %209
  %v212 = vmul.f32 %v202, %v210
  %214 = vrot.lane.b32.xlu0 %v212, 32
  %v215 = vpop.permute.xlu0 %214
  %v217 = vadd.f32 %v207, %v215
  %v218 = vtanh.pop %v217
  %220 = vrot.lane.b32.xlu0 %v218, 64
  %v221 = vpop.permute.xlu0 %220
  %v223 = vmul.f32 %v202, %v221
  %v224 = vpack.c.bf16 %v223, %v223
  %v225 = vpack.c.bf16 %v145, %v145
  %v226 = vld [vmem:[#allocation2 + $0x8] sm:$0xff]
  %228 = vrot.lane.b32.xlu0 %v224, 32
  %v229 = vpop.permute.xlu0 %228
  %v231 = vsel %vm163, %v229, 0
  %233 = vmatpush.bf16.msra.mxu0 0
  %234 = vmatpush.bf16.msra.mxu0 0
  %235 = vmatpush.bf16.msra.mxu0 0
  %236 = vmatpush.bf16.msra.mxu0 0
  %237 = vmatpush.bf16.msra.mxu0 0
  %238 = vmatpush.bf16.msra.mxu0 0
  %239 = vmatpush.bf16.msra.mxu0 %v160
  %240 = vmatpush.bf16.msra.mxu0 %v159
  %241 = vmatmul.bf16.gmra.mxu0 %v231
  %v242 = vpop.f32.mrf.mxu0
  %v243 = vadd.f32 0.0, %v242
  %v244 = vpop.f32.mrf.mxu0
  %245 = vdwg.mxu0
  %v246 = vadd.f32 %v226, %v243
  %v247 = vmul.f32 %v246, %v29
  %v248 = vxor.u32 %v247, 2147483648
  %v249 = vmul.f32 %v248, 1.442695
  %v250 = vpow.pop %v249
  %v251 = vadd.f32 %v250, 1.0
  %v252 = vrcp.pop %v251
  %v253 = vmul.f32 %v251, %v252
  %v254 = vsub.f32 1.0, %v253
  %v255 = vmul.f32 %v252, %v254
  %v256 = vadd.f32 %v252, %v255
  %vm257 = vweird.f32 %v251
  %vm258 = vweird.f32 %v252
  %vm259 = vmor %vm257, %vm258
  %v260 = vsel %vm259, %v252, %v256
  %v261 = vand.u32 2147483647, %v251
  %vm262 = vcmp.eq.f32.partialorder %v261, 8.507059e+37
  %v263 = vand.u32 %v251, 2147483648
  %v264 = vor.u32 1.1754944e-38, %v263
  %v265 = vsel %vm262, %v264, %v260
  %v266 = vmul.f32 1.0, %v265
  %v267 = vmul.f32 %v266, %v29
  %v268 = vadd.f32 %v267, %v30
  %v269 = vmul.f32 %v268, %v217
  %271 = vrot.lane.b32.xlu0 %v268, 64
  %v272 = vpop.permute.xlu0 %271
  %v274 = vmul.f32 %v268, %v272
  %276 = vrot.lane.b32.xlu0 %v274, 32
  %v277 = vpop.permute.xlu0 %276
  %v279 = vadd.f32 %v269, %v277
  %v280 = vtanh.pop %v279
  %282 = vrot.lane.b32.xlu0 %v280, 64
  %v283 = vpop.permute.xlu0 %282
  %v285 = vmul.f32 %v268, %v283
  %v290 = vunpack.c.l.b16 %v37
  %v291 = vunpack.c.l.b16 %v38
  %v292 = vunpack.c.l.b16 %v39
  %v293 = vunpack.c.l.b16 %v40
  %v294 = vpack.c.b16 %v291, %v290
  %v295 = vpack.c.b16 %v293, %v292
  %298 = vmatpush.bf16.msra.mxu0 0
  %299 = vmatpush.bf16.msra.mxu0 0
  %300 = vmatpush.bf16.msra.mxu0 0
  %301 = vmatpush.bf16.msra.mxu0 0
  %302 = vmatpush.bf16.msra.mxu0 0
  %303 = vmatpush.bf16.msra.mxu0 0
  %304 = vmatpush.bf16.msra.mxu0 %v295
  %305 = vmatpush.bf16.msra.mxu0 %v294
  %306 = vmatmul.bf16.gmra.mxu0 %v231
  %v307 = vpop.f32.mrf.mxu0
  %v308 = vadd.f32 %v54, %v307
  %v309 = vpop.f32.mrf.mxu0
  %310 = vdwg.mxu0
  %v315 = vunpack.c.l.b16 %v41
  %v316 = vunpack.c.l.b16 %v42
  %v317 = vunpack.c.l.b16 %v43
  %v318 = vunpack.c.l.b16 %v44
  %v319 = vpack.c.b16 %v316, %v315
  %v320 = vpack.c.b16 %v318, %v317
  %v324 = vsel %vm163, %v225, 0
  %326 = vmatpush.bf16.msra.mxu0 0
  %327 = vmatpush.bf16.msra.mxu0 0
  %328 = vmatpush.bf16.msra.mxu0 0
  %329 = vmatpush.bf16.msra.mxu0 0
  %330 = vmatpush.bf16.msra.mxu0 0
  %331 = vmatpush.bf16.msra.mxu0 0
  %332 = vmatpush.bf16.msra.mxu0 %v320
  %333 = vmatpush.bf16.msra.mxu0 %v319
  %334 = vmatmul.bf16.gmra.mxu0 %v324
  %v335 = vpop.f32.mrf.mxu0
  %v336 = vadd.f32 0.0, %v335
  %v337 = vpop.f32.mrf.mxu0
  %338 = vdwg.mxu0
  %v339 = vadd.f32 %v308, %v336
  %v340 = vmul.f32 %v339, %v29
  %v341 = vxor.u32 %v340, 2147483648
  %v342 = vmul.f32 %v341, 1.442695
  %v343 = vpow.pop %v342
  %v344 = vadd.f32 %v343, 1.0
  %v345 = vrcp.pop %v344
  %v346 = vmul.f32 %v344, %v345
  %v347 = vsub.f32 1.0, %v346
  %v348 = vmul.f32 %v345, %v347
  %v349 = vadd.f32 %v345, %v348
  %vm350 = vweird.f32 %v344
  %vm351 = vweird.f32 %v345
  %vm352 = vmor %vm350, %vm351
  %v353 = vsel %vm352, %v345, %v349
  %v354 = vand.u32 2147483647, %v344
  %vm355 = vcmp.eq.f32.partialorder %v354, 8.507059e+37
  %v356 = vand.u32 %v344, 2147483648
  %v357 = vor.u32 1.1754944e-38, %v356
  %v358 = vsel %vm355, %v357, %v353
  %v359 = vmul.f32 1.0, %v358
  %v360 = vmul.f32 %v359, %v29
  %v361 = vadd.f32 %v360, %v30
  %363 = vrot.lane.b32.xlu0 %v146, 32
  %v364 = vpop.permute.xlu0 %363
  %v366 = vmul.f32 %v361, %v364
  %368 = vrot.lane.b32.xlu0 %v361, 64
  %v369 = vpop.permute.xlu0 %368
  %v371 = vmul.f32 %v361, %v369
  %373 = vrot.lane.b32.xlu0 %v371, 32
  %v374 = vpop.permute.xlu0 %373
  %v376 = vadd.f32 %v366, %v374
  %v377 = vtanh.pop %v376
  %379 = vrot.lane.b32.xlu0 %v377, 64
  %v380 = vpop.permute.xlu0 %379
  %v382 = vmul.f32 %v361, %v380
  %v383 = vpack.c.bf16 %v285, %v285
  %v384 = vpack.c.bf16 %v382, %v382
  %v385 = vpack.c.bf16 %v147, %v147
  %v386 = vld [vmem:[#allocation2 + $0x10] sm:$0xff]
  %388 = vrot.lane.b32.xlu0 %v383, 32
  %v389 = vpop.permute.xlu0 %388
  %v391 = vsel %vm163, %v389, 0
  %393 = vmatpush.bf16.msra.mxu0 0
  %394 = vmatpush.bf16.msra.mxu0 0
  %395 = vmatpush.bf16.msra.mxu0 0
  %396 = vmatpush.bf16.msra.mxu0 0
  %397 = vmatpush.bf16.msra.mxu0 0
  %398 = vmatpush.bf16.msra.mxu0 0
  %399 = vmatpush.bf16.msra.mxu0 %v160
  %400 = vmatpush.bf16.msra.mxu0 %v159
  %401 = vmatmul.bf16.gmra.mxu0 %v391
  %v402 = vpop.f32.mrf.mxu0
  %v403 = vadd.f32 0.0, %v402
  %v404 = vpop.f32.mrf.mxu0
  %405 = vdwg.mxu0
  %v406 = vadd.f32 %v386, %v403
  %v407 = vmul.f32 %v406, %v29
  %v408 = vxor.u32 %v407, 2147483648
  %v409 = vmul.f32 %v408, 1.442695
  %v410 = vpow.pop %v409
  %v411 = vadd.f32 %v410, 1.0
  %v412 = vrcp.pop %v411
  %v413 = vmul.f32 %v411, %v412
  %v414 = vsub.f32 1.0, %v413
  %v415 = vmul.f32 %v412, %v414
  %v416 = vadd.f32 %v412, %v415
  %vm417 = vweird.f32 %v411
  %vm418 = vweird.f32 %v412
  %vm419 = vmor %vm417, %vm418
  %v420 = vsel %vm419, %v412, %v416
  %v421 = vand.u32 2147483647, %v411
  %vm422 = vcmp.eq.f32.partialorder %v421, 8.507059e+37
  %v423 = vand.u32 %v411, 2147483648
  %v424 = vor.u32 1.1754944e-38, %v423
  %v425 = vsel %vm422, %v424, %v420
  %v426 = vmul.f32 1.0, %v425
  %v427 = vmul.f32 %v426, %v29
  %v428 = vadd.f32 %v427, %v30
  %v429 = vmul.f32 %v428, %v279
  %431 = vrot.lane.b32.xlu0 %v428, 64
  %v432 = vpop.permute.xlu0 %431
  %v434 = vmul.f32 %v428, %v432
  %436 = vrot.lane.b32.xlu0 %v434, 32
  %v437 = vpop.permute.xlu0 %436
  %v439 = vadd.f32 %v429, %v437
  %v440 = vtanh.pop %v439
  %442 = vrot.lane.b32.xlu0 %v440, 64
  %v443 = vpop.permute.xlu0 %442
  %v445 = vmul.f32 %v428, %v443
  %446 = vmatpush.bf16.msra.mxu0 0
  %447 = vmatpush.bf16.msra.mxu0 0
  %448 = vmatpush.bf16.msra.mxu0 0
  %449 = vmatpush.bf16.msra.mxu0 0
  %450 = vmatpush.bf16.msra.mxu0 0
  %451 = vmatpush.bf16.msra.mxu0 0
  %452 = vmatpush.bf16.msra.mxu0 %v295
  %453 = vmatpush.bf16.msra.mxu0 %v294
  %454 = vmatmul.bf16.gmra.mxu0 %v391
  %v455 = vpop.f32.mrf.mxu0
  %v456 = vadd.f32 %v54, %v455
  %v457 = vpop.f32.mrf.mxu0
  %458 = vdwg.mxu0
  %460 = vrot.lane.b32.xlu0 %v384, 32
  %v461 = vpop.permute.xlu0 %460
  %v463 = vsel %vm163, %v461, 0
  %465 = vmatpush.bf16.msra.mxu0 0
  %466 = vmatpush.bf16.msra.mxu0 0
  %467 = vmatpush.bf16.msra.mxu0 0
  %468 = vmatpush.bf16.msra.mxu0 0
  %469 = vmatpush.bf16.msra.mxu0 0
  %470 = vmatpush.bf16.msra.mxu0 0
  %471 = vmatpush.bf16.msra.mxu0 %v320
  %472 = vmatpush.bf16.msra.mxu0 %v319
  %473 = vmatmul.bf16.gmra.mxu0 %v463
  %v474 = vpop.f32.mrf.mxu0
  %v475 = vadd.f32 0.0, %v474
  %v476 = vpop.f32.mrf.mxu0
  %477 = vdwg.mxu0
  %v478 = vadd.f32 %v456, %v475
  %v479 = vmul.f32 %v478, %v29
  %v480 = vxor.u32 %v479, 2147483648
  %v481 = vmul.f32 %v480, 1.442695
  %v482 = vpow.pop %v481
  %v483 = vadd.f32 %v482, 1.0
  %v484 = vrcp.pop %v483
  %v485 = vmul.f32 %v483, %v484
  %v486 = vsub.f32 1.0, %v485
  %v487 = vmul.f32 %v484, %v486
  %v488 = vadd.f32 %v484, %v487
  %vm489 = vweird.f32 %v483
  %vm490 = vweird.f32 %v484
  %vm491 = vmor %vm489, %vm490
  %v492 = vsel %vm491, %v484, %v488
  %v493 = vand.u32 2147483647, %v483
  %vm494 = vcmp.eq.f32.partialorder %v493, 8.507059e+37
  %v495 = vand.u32 %v483, 2147483648
  %v496 = vor.u32 1.1754944e-38, %v495
  %v497 = vsel %vm494, %v496, %v492
  %v498 = vmul.f32 1.0, %v497
  %v499 = vmul.f32 %v498, %v29
  %v500 = vadd.f32 %v499, %v30
  %v501 = vmul.f32 %v500, %v376
  %503 = vrot.lane.b32.xlu0 %v500, 64
  %v504 = vpop.permute.xlu0 %503
  %v506 = vmul.f32 %v500, %v504
  %508 = vrot.lane.b32.xlu0 %v506, 32
  %v509 = vpop.permute.xlu0 %508
  %v511 = vadd.f32 %v501, %v509
  %v512 = vtanh.pop %v511
  %514 = vrot.lane.b32.xlu0 %v512, 64
  %v515 = vpop.permute.xlu0 %514
  %v517 = vmul.f32 %v500, %v515
  %v522 = vunpack.c.l.b16 %v45
  %v523 = vunpack.c.l.b16 %v46
  %v524 = vunpack.c.l.b16 %v47
  %v525 = vunpack.c.l.b16 %v48
  %v526 = vpack.c.b16 %v523, %v522
  %v527 = vpack.c.b16 %v525, %v524
  %530 = vmatpush.bf16.msra.mxu0 0
  %531 = vmatpush.bf16.msra.mxu0 0
  %532 = vmatpush.bf16.msra.mxu0 0
  %533 = vmatpush.bf16.msra.mxu0 0
  %534 = vmatpush.bf16.msra.mxu0 0
  %535 = vmatpush.bf16.msra.mxu0 0
  %536 = vmatpush.bf16.msra.mxu0 %v527
  %537 = vmatpush.bf16.msra.mxu0 %v526
  %538 = vmatmul.bf16.gmra.mxu0 %v463
  %v539 = vpop.f32.mrf.mxu0
  %v540 = vadd.f32 %v56, %v539
  %v541 = vpop.f32.mrf.mxu0
  %542 = vdwg.mxu0
  %v547 = vunpack.c.l.b16 %v49
  %v548 = vunpack.c.l.b16 %v50
  %v549 = vunpack.c.l.b16 %v51
  %v550 = vunpack.c.l.b16 %v52
  %v551 = vpack.c.b16 %v548, %v547
  %v552 = vpack.c.b16 %v550, %v549
  %v556 = vsel %vm163, %v385, 0
  %558 = vmatpush.bf16.msra.mxu0 0
  %559 = vmatpush.bf16.msra.mxu0 0
  %560 = vmatpush.bf16.msra.mxu0 0
  %561 = vmatpush.bf16.msra.mxu0 0
  %562 = vmatpush.bf16.msra.mxu0 0
  %563 = vmatpush.bf16.msra.mxu0 0
  %564 = vmatpush.bf16.msra.mxu0 %v552
  %565 = vmatpush.bf16.msra.mxu0 %v551
  %566 = vmatmul.bf16.gmra.mxu0 %v556
  %v567 = vpop.f32.mrf.mxu0
  %v568 = vadd.f32 0.0, %v567
  %v569 = vpop.f32.mrf.mxu0
  %570 = vdwg.mxu0
  %v571 = vadd.f32 %v540, %v568
  %v572 = vmul.f32 %v571, %v29
  %v573 = vxor.u32 %v572, 2147483648
  %v574 = vmul.f32 %v573, 1.442695
  %v575 = vpow.pop %v574
  %v576 = vadd.f32 %v575, 1.0
  %v577 = vrcp.pop %v576
  %v578 = vmul.f32 %v576, %v577
  %v579 = vsub.f32 1.0, %v578
  %v580 = vmul.f32 %v577, %v579
  %v581 = vadd.f32 %v577, %v580
  %vm582 = vweird.f32 %v576
  %vm583 = vweird.f32 %v577
  %vm584 = vmor %vm582, %vm583
  %v585 = vsel %vm584, %v577, %v581
  %v586 = vand.u32 2147483647, %v576
  %vm587 = vcmp.eq.f32.partialorder %v586, 8.507059e+37
  %v588 = vand.u32 %v576, 2147483648
  %v589 = vor.u32 1.1754944e-38, %v588
  %v590 = vsel %vm587, %v589, %v585
  %v591 = vmul.f32 1.0, %v590
  %v592 = vmul.f32 %v591, %v29
  %v593 = vadd.f32 %v592, %v30
  %595 = vrot.lane.b32.xlu0 %v148, 32
  %v596 = vpop.permute.xlu0 %595
  %v598 = vmul.f32 %v593, %v596
  %600 = vrot.lane.b32.xlu0 %v593, 64
  %v601 = vpop.permute.xlu0 %600
  %v603 = vmul.f32 %v593, %v601
  %605 = vrot.lane.b32.xlu0 %v603, 32
  %v606 = vpop.permute.xlu0 %605
  %v608 = vadd.f32 %v598, %v606
  %v609 = vtanh.pop %v608
  %611 = vrot.lane.b32.xlu0 %v609, 64
  %v612 = vpop.permute.xlu0 %611
  %v614 = vmul.f32 %v593, %v612
  %616 = vrot.lane.b32.xlu0 %v614, 32
  %v617 = vpop.permute.xlu0 %616
  %619 = vst.msk [vmem:[#allocation3] sm:$0xff] %vm163, %v617
  %v620 = vpack.c.bf16 %v445, %v445
  %v621 = vpack.c.bf16 %v517, %v517
  %v622 = vpack.c.bf16 %v614, %v614
  %v623 = vld [vmem:[#allocation2 + $0x18] sm:$0xff]
  %625 = vrot.lane.b32.xlu0 %v620, 32
  %v626 = vpop.permute.xlu0 %625
  %v628 = vsel %vm163, %v626, 0
  %630 = vmatpush.bf16.msra.mxu0 0
  %631 = vmatpush.bf16.msra.mxu0 0
  %632 = vmatpush.bf16.msra.mxu0 0
  %633 = vmatpush.bf16.msra.mxu0 0
  %634 = vmatpush.bf16.msra.mxu0 0
  %635 = vmatpush.bf16.msra.mxu0 0
  %636 = vmatpush.bf16.msra.mxu0 %v160
  %637 = vmatpush.bf16.msra.mxu0 %v159
  %638 = vmatmul.bf16.gmra.mxu0 %v628
  %v639 = vpop.f32.mrf.mxu0
  %v640 = vadd.f32 0.0, %v639
  %v641 = vpop.f32.mrf.mxu0
  %642 = vdwg.mxu0
  %v643 = vadd.f32 %v623, %v640
  %v644 = vmul.f32 %v643, %v29
  %v645 = vxor.u32 %v644, 2147483648
  %v646 = vmul.f32 %v645, 1.442695
  %v647 = vpow.pop %v646
  %v648 = vadd.f32 %v647, 1.0
  %v649 = vrcp.pop %v648
  %v650 = vmul.f32 %v648, %v649
  %v651 = vsub.f32 1.0, %v650
  %v652 = vmul.f32 %v649, %v651
  %v653 = vadd.f32 %v649, %v652
  %vm654 = vweird.f32 %v648
  %vm655 = vweird.f32 %v649
  %vm656 = vmor %vm654, %vm655
  %v657 = vsel %vm656, %v649, %v653
  %v658 = vand.u32 2147483647, %v648
  %vm659 = vcmp.eq.f32.partialorder %v658, 8.507059e+37
  %v660 = vand.u32 %v648, 2147483648
  %v661 = vor.u32 1.1754944e-38, %v660
  %v662 = vsel %vm659, %v661, %v657
  %v663 = vmul.f32 1.0, %v662
  %v664 = vmul.f32 %v663, %v29
  %v665 = vadd.f32 %v664, %v30
  %v666 = vmul.f32 %v665, %v439
  %668 = vrot.lane.b32.xlu0 %v665, 64
  %v669 = vpop.permute.xlu0 %668
  %v671 = vmul.f32 %v665, %v669
  %673 = vrot.lane.b32.xlu0 %v671, 32
  %v674 = vpop.permute.xlu0 %673
  %v676 = vadd.f32 %v666, %v674
  %v677 = vtanh.pop %v676
  %679 = vrot.lane.b32.xlu0 %v677, 64
  %v680 = vpop.permute.xlu0 %679
  %v682 = vmul.f32 %v665, %v680
  %683 = vmatpush.bf16.msra.mxu0 0
  %684 = vmatpush.bf16.msra.mxu0 0
  %685 = vmatpush.bf16.msra.mxu0 0
  %686 = vmatpush.bf16.msra.mxu0 0
  %687 = vmatpush.bf16.msra.mxu0 0
  %688 = vmatpush.bf16.msra.mxu0 0
  %689 = vmatpush.bf16.msra.mxu0 %v295
  %690 = vmatpush.bf16.msra.mxu0 %v294
  %691 = vmatmul.bf16.gmra.mxu0 %v628
  %v692 = vpop.f32.mrf.mxu0
  %v693 = vadd.f32 %v54, %v692
  %v694 = vpop.f32.mrf.mxu0
  %695 = vdwg.mxu0
  %697 = vrot.lane.b32.xlu0 %v621, 32
  %v698 = vpop.permute.xlu0 %697
  %v700 = vsel %vm163, %v698, 0
  %702 = vmatpush.bf16.msra.mxu0 0
  %703 = vmatpush.bf16.msra.mxu0 0
  %704 = vmatpush.bf16.msra.mxu0 0
  %705 = vmatpush.bf16.msra.mxu0 0
  %706 = vmatpush.bf16.msra.mxu0 0
  %707 = vmatpush.bf16.msra.mxu0 0
  %708 = vmatpush.bf16.msra.mxu0 %v320
  %709 = vmatpush.bf16.msra.mxu0 %v319
  %710 = vmatmul.bf16.gmra.mxu0 %v700
  %v711 = vpop.f32.mrf.mxu0
  %v712 = vadd.f32 0.0, %v711
  %v713 = vpop.f32.mrf.mxu0
  %714 = vdwg.mxu0
  %v715 = vadd.f32 %v693, %v712
  %v716 = vmul.f32 %v715, %v29
  %v717 = vxor.u32 %v716, 2147483648
  %v718 = vmul.f32 %v717, 1.442695
  %v719 = vpow.pop %v718
  %v720 = vadd.f32 %v719, 1.0
  %v721 = vrcp.pop %v720
  %v722 = vmul.f32 %v720, %v721
  %v723 = vsub.f32 1.0, %v722
  %v724 = vmul.f32 %v721, %v723
  %v725 = vadd.f32 %v721, %v724
  %vm726 = vweird.f32 %v720
  %vm727 = vweird.f32 %v721
  %vm728 = vmor %vm726, %vm727
  %v729 = vsel %vm728, %v721, %v725
  %v730 = vand.u32 2147483647, %v720
  %vm731 = vcmp.eq.f32.partialorder %v730, 8.507059e+37
  %v732 = vand.u32 %v720, 2147483648
  %v733 = vor.u32 1.1754944e-38, %v732
  %v734 = vsel %vm731, %v733, %v729
  %v735 = vmul.f32 1.0, %v734
  %v736 = vmul.f32 %v735, %v29
  %v737 = vadd.f32 %v736, %v30
  %v738 = vmul.f32 %v737, %v511
  %740 = vrot.lane.b32.xlu0 %v737, 64
  %v741 = vpop.permute.xlu0 %740
  %v743 = vmul.f32 %v737, %v741
  %745 = vrot.lane.b32.xlu0 %v743, 32
  %v746 = vpop.permute.xlu0 %745
  %v748 = vadd.f32 %v738, %v746
  %v749 = vtanh.pop %v748
  %751 = vrot.lane.b32.xlu0 %v749, 64
  %v752 = vpop.permute.xlu0 %751
  %v754 = vmul.f32 %v737, %v752
  %755 = vmatpush.bf16.msra.mxu0 0
  %756 = vmatpush.bf16.msra.mxu0 0
  %757 = vmatpush.bf16.msra.mxu0 0
  %758 = vmatpush.bf16.msra.mxu0 0
  %759 = vmatpush.bf16.msra.mxu0 0
  %760 = vmatpush.bf16.msra.mxu0 0
  %761 = vmatpush.bf16.msra.mxu0 %v527
  %762 = vmatpush.bf16.msra.mxu0 %v526
  %763 = vmatmul.bf16.gmra.mxu0 %v700
  %v764 = vpop.f32.mrf.mxu0
  %v765 = vadd.f32 %v56, %v764
  %v766 = vpop.f32.mrf.mxu0
  %767 = vdwg.mxu0
  %769 = vrot.lane.b32.xlu0 %v622, 32
  %v770 = vpop.permute.xlu0 %769
  %v772 = vsel %vm163, %v770, 0
  %774 = vmatpush.bf16.msra.mxu0 0
  %775 = vmatpush.bf16.msra.mxu0 0
  %776 = vmatpush.bf16.msra.mxu0 0
  %777 = vmatpush.bf16.msra.mxu0 0
  %778 = vmatpush.bf16.msra.mxu0 0
  %779 = vmatpush.bf16.msra.mxu0 0
  %780 = vmatpush.bf16.msra.mxu0 %v552
  %781 = vmatpush.bf16.msra.mxu0 %v551
  %782 = vmatmul.bf16.gmra.mxu0 %v772
  %v783 = vpop.f32.mrf.mxu0
  %v784 = vadd.f32 0.0, %v783
  %v785 = vpop.f32.mrf.mxu0
  %786 = vdwg.mxu0
  %v787 = vadd.f32 %v765, %v784
  %v788 = vmul.f32 %v787, %v29
  %v789 = vxor.u32 %v788, 2147483648
  %v790 = vmul.f32 %v789, 1.442695
  %v791 = vpow.pop %v790
  %v792 = vadd.f32 %v791, 1.0
  %v793 = vrcp.pop %v792
  %v794 = vmul.f32 %v792, %v793
  %v795 = vsub.f32 1.0, %v794
  %v796 = vmul.f32 %v793, %v795
  %v797 = vadd.f32 %v793, %v796
  %vm798 = vweird.f32 %v792
  %vm799 = vweird.f32 %v793
  %vm800 = vmor %vm798, %vm799
  %v801 = vsel %vm800, %v793, %v797
  %v802 = vand.u32 2147483647, %v792
  %vm803 = vcmp.eq.f32.partialorder %v802, 8.507059e+37
  %v804 = vand.u32 %v792, 2147483648
  %v805 = vor.u32 1.1754944e-38, %v804
  %v806 = vsel %vm803, %v805, %v801
  %v807 = vmul.f32 1.0, %v806
  %v808 = vmul.f32 %v807, %v29
  %v809 = vadd.f32 %v808, %v30
  %v810 = vmul.f32 %v809, %v608
  %812 = vrot.lane.b32.xlu0 %v809, 64
  %v813 = vpop.permute.xlu0 %812
  %v815 = vmul.f32 %v809, %v813
  %817 = vrot.lane.b32.xlu0 %v815, 32
  %v818 = vpop.permute.xlu0 %817
  %v820 = vadd.f32 %v810, %v818
  %v821 = vtanh.pop %v820
  %823 = vrot.lane.b32.xlu0 %v821, 64
  %v824 = vpop.permute.xlu0 %823
  %v826 = vmul.f32 %v809, %v824
  %828 = vrot.lane.b32.xlu0 %v826, 32
  %v829 = vpop.permute.xlu0 %828
  %831 = vst.msk [vmem:[#allocation3 + $0x8] sm:$0xff] %vm163, %v829
  %v832 = vpack.c.bf16 %v682, %v682
  %v833 = vpack.c.bf16 %v754, %v754
  %v834 = vpack.c.bf16 %v826, %v826
  %v835 = vld [vmem:[#allocation2 + $0x20] sm:$0xff]
  %837 = vrot.lane.b32.xlu0 %v832, 32
  %v838 = vpop.permute.xlu0 %837
  %v840 = vsel %vm163, %v838, 0
  %842 = vmatpush.bf16.msra.mxu0 0
  %843 = vmatpush.bf16.msra.mxu0 0
  %844 = vmatpush.bf16.msra.mxu0 0
  %845 = vmatpush.bf16.msra.mxu0 0
  %846 = vmatpush.bf16.msra.mxu0 0
  %847 = vmatpush.bf16.msra.mxu0 0
  %848 = vmatpush.bf16.msra.mxu0 %v160
  %849 = vmatpush.bf16.msra.mxu0 %v159
  %850 = vmatmul.bf16.gmra.mxu0 %v840
  %v851 = vpop.f32.mrf.mxu0
  %v852 = vadd.f32 0.0, %v851
  %v853 = vpop.f32.mrf.mxu0
  %854 = vdwg.mxu0
  %v855 = vadd.f32 %v835, %v852
  %v856 = vmul.f32 %v855, %v29
  %v857 = vxor.u32 %v856, 2147483648
  %v858 = vmul.f32 %v857, 1.442695
  %v859 = vpow.pop %v858
  %v860 = vadd.f32 %v859, 1.0
  %v861 = vrcp.pop %v860
  %v862 = vmul.f32 %v860, %v861
  %v863 = vsub.f32 1.0, %v862
  %v864 = vmul.f32 %v861, %v863
  %v865 = vadd.f32 %v861, %v864
  %vm866 = vweird.f32 %v860
  %vm867 = vweird.f32 %v861
  %vm868 = vmor %vm866, %vm867
  %v869 = vsel %vm868, %v861, %v865
  %v870 = vand.u32 2147483647, %v860
  %vm871 = vcmp.eq.f32.partialorder %v870, 8.507059e+37
  %v872 = vand.u32 %v860, 2147483648
  %v873 = vor.u32 1.1754944e-38, %v872
  %v874 = vsel %vm871, %v873, %v869
  %v875 = vmul.f32 1.0, %v874
  %v876 = vmul.f32 %v875, %v29
  %v877 = vadd.f32 %v876, %v30
  %v878 = vmul.f32 %v877, %v676
  %880 = vrot.lane.b32.xlu0 %v877, 64
  %v881 = vpop.permute.xlu0 %880
  %v883 = vmul.f32 %v877, %v881
  %885 = vrot.lane.b32.xlu0 %v883, 32
  %v886 = vpop.permute.xlu0 %885
  %v888 = vadd.f32 %v878, %v886
  %v889 = vtanh.pop %v888
  %891 = vrot.lane.b32.xlu0 %v889, 64
  %v892 = vpop.permute.xlu0 %891
  %v894 = vmul.f32 %v877, %v892
  %895 = vmatpush.bf16.msra.mxu0 0
  %896 = vmatpush.bf16.msra.mxu0 0
  %897 = vmatpush.bf16.msra.mxu0 0
  %898 = vmatpush.bf16.msra.mxu0 0
  %899 = vmatpush.bf16.msra.mxu0 0
  %900 = vmatpush.bf16.msra.mxu0 0
  %901 = vmatpush.bf16.msra.mxu0 %v295
  %902 = vmatpush.bf16.msra.mxu0 %v294
  %903 = vmatmul.bf16.gmra.mxu0 %v840
  %v904 = vpop.f32.mrf.mxu0
  %v905 = vadd.f32 %v54, %v904
  %v906 = vpop.f32.mrf.mxu0
  %907 = vdwg.mxu0
  %909 = vrot.lane.b32.xlu0 %v833, 32
  %v910 = vpop.permute.xlu0 %909
  %v912 = vsel %vm163, %v910, 0
  %914 = vmatpush.bf16.msra.mxu0 0
  %915 = vmatpush.bf16.msra.mxu0 0
  %916 = vmatpush.bf16.msra.mxu0 0
  %917 = vmatpush.bf16.msra.mxu0 0
  %918 = vmatpush.bf16.msra.mxu0 0
  %919 = vmatpush.bf16.msra.mxu0 0
  %920 = vmatpush.bf16.msra.mxu0 %v320
  %921 = vmatpush.bf16.msra.mxu0 %v319
  %922 = vmatmul.bf16.gmra.mxu0 %v912
  %v923 = vpop.f32.mrf.mxu0
  %v924 = vadd.f32 0.0, %v923
  %v925 = vpop.f32.mrf.mxu0
  %926 = vdwg.mxu0
  %v927 = vadd.f32 %v905, %v924
  %v928 = vmul.f32 %v927, %v29
  %v929 = vxor.u32 %v928, 2147483648
  %v930 = vmul.f32 %v929, 1.442695
  %v931 = vpow.pop %v930
  %v932 = vadd.f32 %v931, 1.0
  %v933 = vrcp.pop %v932
  %v934 = vmul.f32 %v932, %v933
  %v935 = vsub.f32 1.0, %v934
  %v936 = vmul.f32 %v933, %v935
  %v937 = vadd.f32 %v933, %v936
  %vm938 = vweird.f32 %v932
  %vm939 = vweird.f32 %v933
  %vm940 = vmor %vm938, %vm939
  %v941 = vsel %vm940, %v933, %v937
  %v942 = vand.u32 2147483647, %v932
  %vm943 = vcmp.eq.f32.partialorder %v942, 8.507059e+37
  %v944 = vand.u32 %v932, 2147483648
  %v945 = vor.u32 1.1754944e-38, %v944
  %v946 = vsel %vm943, %v945, %v941
  %v947 = vmul.f32 1.0, %v946
  %v948 = vmul.f32 %v947, %v29
  %v949 = vadd.f32 %v948, %v30
  %v950 = vmul.f32 %v949, %v748
  %952 = vrot.lane.b32.xlu0 %v949, 64
  %v953 = vpop.permute.xlu0 %952
  %v955 = vmul.f32 %v949, %v953
  %957 = vrot.lane.b32.xlu0 %v955, 32
  %v958 = vpop.permute.xlu0 %957
  %v960 = vadd.f32 %v950, %v958
  %v961 = vtanh.pop %v960
  %963 = vrot.lane.b32.xlu0 %v961, 64
  %v964 = vpop.permute.xlu0 %963
  %v966 = vmul.f32 %v949, %v964
  %967 = vmatpush.bf16.msra.mxu0 0
  %968 = vmatpush.bf16.msra.mxu0 0
  %969 = vmatpush.bf16.msra.mxu0 0
  %970 = vmatpush.bf16.msra.mxu0 0
  %971 = vmatpush.bf16.msra.mxu0 0
  %972 = vmatpush.bf16.msra.mxu0 0
  %973 = vmatpush.bf16.msra.mxu0 %v527
  %974 = vmatpush.bf16.msra.mxu0 %v526
  %975 = vmatmul.bf16.gmra.mxu0 %v912
  %v976 = vpop.f32.mrf.mxu0
  %v977 = vadd.f32 %v56, %v976
  %v978 = vpop.f32.mrf.mxu0
  %979 = vdwg.mxu0
  %981 = vrot.lane.b32.xlu0 %v834, 32
  %v982 = vpop.permute.xlu0 %981
  %v984 = vsel %vm163, %v982, 0
  %986 = vmatpush.bf16.msra.mxu0 0
  %987 = vmatpush.bf16.msra.mxu0 0
  %988 = vmatpush.bf16.msra.mxu0 0
  %989 = vmatpush.bf16.msra.mxu0 0
  %990 = vmatpush.bf16.msra.mxu0 0
  %991 = vmatpush.bf16.msra.mxu0 0
  %992 = vmatpush.bf16.msra.mxu0 %v552
  %993 = vmatpush.bf16.msra.mxu0 %v551
  %994 = vmatmul.bf16.gmra.mxu0 %v984
  %v995 = vpop.f32.mrf.mxu0
  %v996 = vadd.f32 0.0, %v995
  %v997 = vpop.f32.mrf.mxu0
  %998 = vdwg.mxu0
  %v999 = vadd.f32 %v977, %v996
  %v1000 = vmul.f32 %v999, %v29
  %v1001 = vxor.u32 %v1000, 2147483648
  %v1002 = vmul.f32 %v1001, 1.442695
  %v1003 = vpow.pop %v1002
  %v1004 = vadd.f32 %v1003, 1.0
  %v1005 = vrcp.pop %v1004
  %v1006 = vmul.f32 %v1004, %v1005
  %v1007 = vsub.f32 1.0, %v1006
  %v1008 = vmul.f32 %v1005, %v1007
  %v1009 = vadd.f32 %v1005, %v1008
  %vm1010 = vweird.f32 %v1004
  %vm1011 = vweird.f32 %v1005
  %vm1012 = vmor %vm1010, %vm1011
  %v1013 = vsel %vm1012, %v1005, %v1009
  %v1014 = vand.u32 2147483647, %v1004
  %vm1015 = vcmp.eq.f32.partialorder %v1014, 8.507059e+37
  %v1016 = vand.u32 %v1004, 2147483648
  %v1017 = vor.u32 1.1754944e-38, %v1016
  %v1018 = vsel %vm1015, %v1017, %v1013
  %v1019 = vmul.f32 1.0, %v1018
  %v1020 = vmul.f32 %v1019, %v29
  %v1021 = vadd.f32 %v1020, %v30
  %v1022 = vmul.f32 %v1021, %v820
  %1024 = vrot.lane.b32.xlu0 %v1021, 64
  %v1025 = vpop.permute.xlu0 %1024
  %v1027 = vmul.f32 %v1021, %v1025
  %1029 = vrot.lane.b32.xlu0 %v1027, 32
  %v1030 = vpop.permute.xlu0 %1029
  %v1032 = vadd.f32 %v1022, %v1030
  %v1033 = vtanh.pop %v1032
  %1035 = vrot.lane.b32.xlu0 %v1033, 64
  %v1036 = vpop.permute.xlu0 %1035
  %v1038 = vmul.f32 %v1021, %v1036
  %1040 = vrot.lane.b32.xlu0 %v1038, 32
  %v1041 = vpop.permute.xlu0 %1040
  %1043 = vst.msk [vmem:[#allocation3 + $0x10] sm:$0xff] %vm163, %v1041
  %v1044 = vpack.c.bf16 %v894, %v894
  %v1045 = vpack.c.bf16 %v966, %v966
  %v1046 = vpack.c.bf16 %v1038, %v1038
  %v1047 = vld [vmem:[#allocation2 + $0x28] sm:$0xff]
  %1049 = vrot.lane.b32.xlu0 %v1044, 32
  %v1050 = vpop.permute.xlu0 %1049
  %v1052 = vsel %vm163, %v1050, 0
  %1054 = vmatpush.bf16.msra.mxu0 0
  %1055 = vmatpush.bf16.msra.mxu0 0
  %1056 = vmatpush.bf16.msra.mxu0 0
  %1057 = vmatpush.bf16.msra.mxu0 0
  %1058 = vmatpush.bf16.msra.mxu0 0
  %1059 = vmatpush.bf16.msra.mxu0 0
  %1060 = vmatpush.bf16.msra.mxu0 %v160
  %1061 = vmatpush.bf16.msra.mxu0 %v159
  %1062 = vmatmul.bf16.gmra.mxu0 %v1052
  %v1063 = vpop.f32.mrf.mxu0
  %v1064 = vadd.f32 0.0, %v1063
  %v1065 = vpop.f32.mrf.mxu0
  %1066 = vdwg.mxu0
  %v1067 = vadd.f32 %v1047, %v1064
  %v1068 = vmul.f32 %v1067, %v29
  %v1069 = vxor.u32 %v1068, 2147483648
  %v1070 = vmul.f32 %v1069, 1.442695
  %v1071 = vpow.pop %v1070
  %v1072 = vadd.f32 %v1071, 1.0
  %v1073 = vrcp.pop %v1072
  %v1074 = vmul.f32 %v1072, %v1073
  %v1075 = vsub.f32 1.0, %v1074
  %v1076 = vmul.f32 %v1073, %v1075
  %v1077 = vadd.f32 %v1073, %v1076
  %vm1078 = vweird.f32 %v1072
  %vm1079 = vweird.f32 %v1073
  %vm1080 = vmor %vm1078, %vm1079
  %v1081 = vsel %vm1080, %v1073, %v1077
  %v1082 = vand.u32 2147483647, %v1072
  %vm1083 = vcmp.eq.f32.partialorder %v1082, 8.507059e+37
  %v1084 = vand.u32 %v1072, 2147483648
  %v1085 = vor.u32 1.1754944e-38, %v1084
  %v1086 = vsel %vm1083, %v1085, %v1081
  %v1087 = vmul.f32 1.0, %v1086
  %v1088 = vmul.f32 %v1087, %v29
  %v1089 = vadd.f32 %v1088, %v30
  %v1090 = vmul.f32 %v1089, %v888
  %1092 = vrot.lane.b32.xlu0 %v1089, 64
  %v1093 = vpop.permute.xlu0 %1092
  %v1095 = vmul.f32 %v1089, %v1093
  %1097 = vrot.lane.b32.xlu0 %v1095, 32
  %v1098 = vpop.permute.xlu0 %1097
  %v1100 = vadd.f32 %v1090, %v1098
  %v1101 = vtanh.pop %v1100
  %1103 = vrot.lane.b32.xlu0 %v1101, 64
  %v1104 = vpop.permute.xlu0 %1103
  %v1106 = vmul.f32 %v1089, %v1104
  %1107 = vmatpush.bf16.msra.mxu0 0
  %1108 = vmatpush.bf16.msra.mxu0 0
  %1109 = vmatpush.bf16.msra.mxu0 0
  %1110 = vmatpush.bf16.msra.mxu0 0
  %1111 = vmatpush.bf16.msra.mxu0 0
  %1112 = vmatpush.bf16.msra.mxu0 0
  %1113 = vmatpush.bf16.msra.mxu0 %v295
  %1114 = vmatpush.bf16.msra.mxu0 %v294
  %1115 = vmatmul.bf16.gmra.mxu0 %v1052
  %v1116 = vpop.f32.mrf.mxu0
  %v1117 = vadd.f32 %v54, %v1116
  %v1118 = vpop.f32.mrf.mxu0
  %1119 = vdwg.mxu0
  %1121 = vrot.lane.b32.xlu0 %v1045, 32
  %v1122 = vpop.permute.xlu0 %1121
  %v1124 = vsel %vm163, %v1122, 0
  %1126 = vmatpush.bf16.msra.mxu0 0
  %1127 = vmatpush.bf16.msra.mxu0 0
  %1128 = vmatpush.bf16.msra.mxu0 0
  %1129 = vmatpush.bf16.msra.mxu0 0
  %1130 = vmatpush.bf16.msra.mxu0 0
  %1131 = vmatpush.bf16.msra.mxu0 0
  %1132 = vmatpush.bf16.msra.mxu0 %v320
  %1133 = vmatpush.bf16.msra.mxu0 %v319
  %1134 = vmatmul.bf16.gmra.mxu0 %v1124
  %v1135 = vpop.f32.mrf.mxu0
  %v1136 = vadd.f32 0.0, %v1135
  %v1137 = vpop.f32.mrf.mxu0
  %1138 = vdwg.mxu0
  %v1139 = vadd.f32 %v1117, %v1136
  %v1140 = vmul.f32 %v1139, %v29
  %v1141 = vxor.u32 %v1140, 2147483648
  %v1142 = vmul.f32 %v1141, 1.442695
  %v1143 = vpow.pop %v1142
  %v1144 = vadd.f32 %v1143, 1.0
  %v1145 = vrcp.pop %v1144
  %v1146 = vmul.f32 %v1144, %v1145
  %v1147 = vsub.f32 1.0, %v1146
  %v1148 = vmul.f32 %v1145, %v1147
  %v1149 = vadd.f32 %v1145, %v1148
  %vm1150 = vweird.f32 %v1144
  %vm1151 = vweird.f32 %v1145
  %vm1152 = vmor %vm1150, %vm1151
  %v1153 = vsel %vm1152, %v1145, %v1149
  %v1154 = vand.u32 2147483647, %v1144
  %vm1155 = vcmp.eq.f32.partialorder %v1154, 8.507059e+37
  %v1156 = vand.u32 %v1144, 2147483648
  %v1157 = vor.u32 1.1754944e-38, %v1156
  %v1158 = vsel %vm1155, %v1157, %v1153
  %v1159 = vmul.f32 1.0, %v1158
  %v1160 = vmul.f32 %v1159, %v29
  %v1161 = vadd.f32 %v1160, %v30
  %v1162 = vmul.f32 %v1161, %v960
  %1164 = vrot.lane.b32.xlu0 %v1161, 64
  %v1165 = vpop.permute.xlu0 %1164
  %v1167 = vmul.f32 %v1161, %v1165
  %1169 = vrot.lane.b32.xlu0 %v1167, 32
  %v1170 = vpop.permute.xlu0 %1169
  %v1172 = vadd.f32 %v1162, %v1170
  %v1173 = vtanh.pop %v1172
  %1175 = vrot.lane.b32.xlu0 %v1173, 64
  %v1176 = vpop.permute.xlu0 %1175
  %v1178 = vmul.f32 %v1161, %v1176
  %1179 = vmatpush.bf16.msra.mxu0 0
  %1180 = vmatpush.bf16.msra.mxu0 0
  %1181 = vmatpush.bf16.msra.mxu0 0
  %1182 = vmatpush.bf16.msra.mxu0 0
  %1183 = vmatpush.bf16.msra.mxu0 0
  %1184 = vmatpush.bf16.msra.mxu0 0
  %1185 = vmatpush.bf16.msra.mxu0 %v527
  %1186 = vmatpush.bf16.msra.mxu0 %v526
  %1187 = vmatmul.bf16.gmra.mxu0 %v1124
  %v1188 = vpop.f32.mrf.mxu0
  %v1189 = vadd.f32 %v56, %v1188
  %v1190 = vpop.f32.mrf.mxu0
  %1191 = vdwg.mxu0
  %1193 = vrot.lane.b32.xlu0 %v1046, 32
  %v1194 = vpop.permute.xlu0 %1193
  %v1196 = vsel %vm163, %v1194, 0
  %1198 = vmatpush.bf16.msra.mxu0 0
  %1199 = vmatpush.bf16.msra.mxu0 0
  %1200 = vmatpush.bf16.msra.mxu0 0
  %1201 = vmatpush.bf16.msra.mxu0 0
  %1202 = vmatpush.bf16.msra.mxu0 0
  %1203 = vmatpush.bf16.msra.mxu0 0
  %1204 = vmatpush.bf16.msra.mxu0 %v552
  %1205 = vmatpush.bf16.msra.mxu0 %v551
  %1206 = vmatmul.bf16.gmra.mxu0 %v1196
  %v1207 = vpop.f32.mrf.mxu0
  %v1208 = vadd.f32 0.0, %v1207
  %v1209 = vpop.f32.mrf.mxu0
  %1210 = vdwg.mxu0
  %v1211 = vadd.f32 %v1189, %v1208
  %v1212 = vmul.f32 %v1211, %v29
  %v1213 = vxor.u32 %v1212, 2147483648
  %v1214 = vmul.f32 %v1213, 1.442695
  %v1215 = vpow.pop %v1214
  %v1216 = vadd.f32 %v1215, 1.0
  %v1217 = vrcp.pop %v1216
  %v1218 = vmul.f32 %v1216, %v1217
  %v1219 = vsub.f32 1.0, %v1218
  %v1220 = vmul.f32 %v1217, %v1219
  %v1221 = vadd.f32 %v1217, %v1220
  %vm1222 = vweird.f32 %v1216
  %vm1223 = vweird.f32 %v1217
  %vm1224 = vmor %vm1222, %vm1223
  %v1225 = vsel %vm1224, %v1217, %v1221
  %v1226 = vand.u32 2147483647, %v1216
  %vm1227 = vcmp.eq.f32.partialorder %v1226, 8.507059e+37
  %v1228 = vand.u32 %v1216, 2147483648
  %v1229 = vor.u32 1.1754944e-38, %v1228
  %v1230 = vsel %vm1227, %v1229, %v1225
  %v1231 = vmul.f32 1.0, %v1230
  %v1232 = vmul.f32 %v1231, %v29
  %v1233 = vadd.f32 %v1232, %v30
  %v1234 = vmul.f32 %v1233, %v1032
  %1236 = vrot.lane.b32.xlu0 %v1233, 64
  %v1237 = vpop.permute.xlu0 %1236
  %v1239 = vmul.f32 %v1233, %v1237
  %1241 = vrot.lane.b32.xlu0 %v1239, 32
  %v1242 = vpop.permute.xlu0 %1241
  %v1244 = vadd.f32 %v1234, %v1242
  %v1245 = vtanh.pop %v1244
  %1247 = vrot.lane.b32.xlu0 %v1245, 64
  %v1248 = vpop.permute.xlu0 %1247
  %v1250 = vmul.f32 %v1233, %v1248
  %1252 = vrot.lane.b32.xlu0 %v1250, 32
  %v1253 = vpop.permute.xlu0 %1252
  %1255 = vst.msk [vmem:[#allocation3 + $0x18] sm:$0xff] %vm163, %v1253
  %v1256 = vpack.c.bf16 %v1106, %v1106
  %v1257 = vpack.c.bf16 %v1178, %v1178
  %v1258 = vpack.c.bf16 %v1250, %v1250
  %v1259 = vld [vmem:[#allocation2 + $0x30] sm:$0xff]
  %1261 = vrot.lane.b32.xlu0 %v1256, 32
  %v1262 = vpop.permute.xlu0 %1261
  %v1264 = vsel %vm163, %v1262, 0
  %1266 = vmatpush.bf16.msra.mxu0 0
  %1267 = vmatpush.bf16.msra.mxu0 0
  %1268 = vmatpush.bf16.msra.mxu0 0
  %1269 = vmatpush.bf16.msra.mxu0 0
  %1270 = vmatpush.bf16.msra.mxu0 0
  %1271 = vmatpush.bf16.msra.mxu0 0
  %1272 = vmatpush.bf16.msra.mxu0 %v160
  %1273 = vmatpush.bf16.msra.mxu0 %v159
  %1274 = vmatmul.bf16.gmra.mxu0 %v1264
  %v1275 = vpop.f32.mrf.mxu0
  %v1276 = vadd.f32 0.0, %v1275
  %v1277 = vpop.f32.mrf.mxu0
  %1278 = vdwg.mxu0
  %v1279 = vadd.f32 %v1259, %v1276
  %v1280 = vmul.f32 %v1279, %v29
  %v1281 = vxor.u32 %v1280, 2147483648
  %v1282 = vmul.f32 %v1281, 1.442695
  %v1283 = vpow.pop %v1282
  %v1284 = vadd.f32 %v1283, 1.0
  %v1285 = vrcp.pop %v1284
  %v1286 = vmul.f32 %v1284, %v1285
  %v1287 = vsub.f32 1.0, %v1286
  %v1288 = vmul.f32 %v1285, %v1287
  %v1289 = vadd.f32 %v1285, %v1288
  %vm1290 = vweird.f32 %v1284
  %vm1291 = vweird.f32 %v1285
  %vm1292 = vmor %vm1290, %vm1291
  %v1293 = vsel %vm1292, %v1285, %v1289
  %v1294 = vand.u32 2147483647, %v1284
  %vm1295 = vcmp.eq.f32.partialorder %v1294, 8.507059e+37
  %v1296 = vand.u32 %v1284, 2147483648
  %v1297 = vor.u32 1.1754944e-38, %v1296
  %v1298 = vsel %vm1295, %v1297, %v1293
  %v1299 = vmul.f32 1.0, %v1298
  %v1300 = vmul.f32 %v1299, %v29
  %v1301 = vadd.f32 %v1300, %v30
  %v1302 = vmul.f32 %v1301, %v1100
  %1304 = vrot.lane.b32.xlu0 %v1301, 64
  %v1305 = vpop.permute.xlu0 %1304
  %v1307 = vmul.f32 %v1301, %v1305
  %1309 = vrot.lane.b32.xlu0 %v1307, 32
  %v1310 = vpop.permute.xlu0 %1309
  %v1312 = vadd.f32 %v1302, %v1310
  %v1313 = vtanh.pop %v1312
  %1315 = vrot.lane.b32.xlu0 %v1313, 64
  %v1316 = vpop.permute.xlu0 %1315
  %v1318 = vmul.f32 %v1301, %v1316
  %1319 = vmatpush.bf16.msra.mxu0 0
  %1320 = vmatpush.bf16.msra.mxu0 0
  %1321 = vmatpush.bf16.msra.mxu0 0
  %1322 = vmatpush.bf16.msra.mxu0 0
  %1323 = vmatpush.bf16.msra.mxu0 0
  %1324 = vmatpush.bf16.msra.mxu0 0
  %1325 = vmatpush.bf16.msra.mxu0 %v295
  %1326 = vmatpush.bf16.msra.mxu0 %v294
  %1327 = vmatmul.bf16.gmra.mxu0 %v1264
  %v1328 = vpop.f32.mrf.mxu0
  %v1329 = vadd.f32 %v54, %v1328
  %v1330 = vpop.f32.mrf.mxu0
  %1331 = vdwg.mxu0
  %1333 = vrot.lane.b32.xlu0 %v1257, 32
  %v1334 = vpop.permute.xlu0 %1333
  %v1336 = vsel %vm163, %v1334, 0
  %1338 = vmatpush.bf16.msra.mxu0 0
  %1339 = vmatpush.bf16.msra.mxu0 0
  %1340 = vmatpush.bf16.msra.mxu0 0
  %1341 = vmatpush.bf16.msra.mxu0 0
  %1342 = vmatpush.bf16.msra.mxu0 0
  %1343 = vmatpush.bf16.msra.mxu0 0
  %1344 = vmatpush.bf16.msra.mxu0 %v320
  %1345 = vmatpush.bf16.msra.mxu0 %v319
  %1346 = vmatmul.bf16.gmra.mxu0 %v1336
  %v1347 = vpop.f32.mrf.mxu0
  %v1348 = vadd.f32 0.0, %v1347
  %v1349 = vpop.f32.mrf.mxu0
  %1350 = vdwg.mxu0
  %v1351 = vadd.f32 %v1329, %v1348
  %v1352 = vmul.f32 %v1351, %v29
  %v1353 = vxor.u32 %v1352, 2147483648
  %v1354 = vmul.f32 %v1353, 1.442695
  %v1355 = vpow.pop %v1354
  %v1356 = vadd.f32 %v1355, 1.0
  %v1357 = vrcp.pop %v1356
  %v1358 = vmul.f32 %v1356, %v1357
  %v1359 = vsub.f32 1.0, %v1358
  %v1360 = vmul.f32 %v1357, %v1359
  %v1361 = vadd.f32 %v1357, %v1360
  %vm1362 = vweird.f32 %v1356
  %vm1363 = vweird.f32 %v1357
  %vm1364 = vmor %vm1362, %vm1363
  %v1365 = vsel %vm1364, %v1357, %v1361
  %v1366 = vand.u32 2147483647, %v1356
  %vm1367 = vcmp.eq.f32.partialorder %v1366, 8.507059e+37
  %v1368 = vand.u32 %v1356, 2147483648
  %v1369 = vor.u32 1.1754944e-38, %v1368
  %v1370 = vsel %vm1367, %v1369, %v1365
  %v1371 = vmul.f32 1.0, %v1370
  %v1372 = vmul.f32 %v1371, %v29
  %v1373 = vadd.f32 %v1372, %v30
  %v1374 = vmul.f32 %v1373, %v1172
  %1376 = vrot.lane.b32.xlu0 %v1373, 64
  %v1377 = vpop.permute.xlu0 %1376
  %v1379 = vmul.f32 %v1373, %v1377
  %1381 = vrot.lane.b32.xlu0 %v1379, 32
  %v1382 = vpop.permute.xlu0 %1381
  %v1384 = vadd.f32 %v1374, %v1382
  %v1385 = vtanh.pop %v1384
  %1387 = vrot.lane.b32.xlu0 %v1385, 64
  %v1388 = vpop.permute.xlu0 %1387
  %v1390 = vmul.f32 %v1373, %v1388
  %1391 = vmatpush.bf16.msra.mxu0 0
  %1392 = vmatpush.bf16.msra.mxu0 0
  %1393 = vmatpush.bf16.msra.mxu0 0
  %1394 = vmatpush.bf16.msra.mxu0 0
  %1395 = vmatpush.bf16.msra.mxu0 0
  %1396 = vmatpush.bf16.msra.mxu0 0
  %1397 = vmatpush.bf16.msra.mxu0 %v527
  %1398 = vmatpush.bf16.msra.mxu0 %v526
  %1399 = vmatmul.bf16.gmra.mxu0 %v1336
  %v1400 = vpop.f32.mrf.mxu0
  %v1401 = vadd.f32 %v56, %v1400
  %v1402 = vpop.f32.mrf.mxu0
  %1403 = vdwg.mxu0
  %1405 = vrot.lane.b32.xlu0 %v1258, 32
  %v1406 = vpop.permute.xlu0 %1405
  %v1408 = vsel %vm163, %v1406, 0
  %1410 = vmatpush.bf16.msra.mxu0 0
  %1411 = vmatpush.bf16.msra.mxu0 0
  %1412 = vmatpush.bf16.msra.mxu0 0
  %1413 = vmatpush.bf16.msra.mxu0 0
  %1414 = vmatpush.bf16.msra.mxu0 0
  %1415 = vmatpush.bf16.msra.mxu0 0
  %1416 = vmatpush.bf16.msra.mxu0 %v552
  %1417 = vmatpush.bf16.msra.mxu0 %v551
  %1418 = vmatmul.bf16.gmra.mxu0 %v1408
  %v1419 = vpop.f32.mrf.mxu0
  %v1420 = vadd.f32 0.0, %v1419
  %v1421 = vpop.f32.mrf.mxu0
  %1422 = vdwg.mxu0
  %v1423 = vadd.f32 %v1401, %v1420
  %v1424 = vmul.f32 %v1423, %v29
  %v1425 = vxor.u32 %v1424, 2147483648
  %v1426 = vmul.f32 %v1425, 1.442695
  %v1427 = vpow.pop %v1426
  %v1428 = vadd.f32 %v1427, 1.0
  %v1429 = vrcp.pop %v1428
  %v1430 = vmul.f32 %v1428, %v1429
  %v1431 = vsub.f32 1.0, %v1430
  %v1432 = vmul.f32 %v1429, %v1431
  %v1433 = vadd.f32 %v1429, %v1432
  %vm1434 = vweird.f32 %v1428
  %vm1435 = vweird.f32 %v1429
  %vm1436 = vmor %vm1434, %vm1435
  %v1437 = vsel %vm1436, %v1429, %v1433
  %v1438 = vand.u32 2147483647, %v1428
  %vm1439 = vcmp.eq.f32.partialorder %v1438, 8.507059e+37
  %v1440 = vand.u32 %v1428, 2147483648
  %v1441 = vor.u32 1.1754944e-38, %v1440
  %v1442 = vsel %vm1439, %v1441, %v1437
  %v1443 = vmul.f32 1.0, %v1442
  %v1444 = vmul.f32 %v1443, %v29
  %v1445 = vadd.f32 %v1444, %v30
  %v1446 = vmul.f32 %v1445, %v1244
  %1448 = vrot.lane.b32.xlu0 %v1445, 64
  %v1449 = vpop.permute.xlu0 %1448
  %v1451 = vmul.f32 %v1445, %v1449
  %1453 = vrot.lane.b32.xlu0 %v1451, 32
  %v1454 = vpop.permute.xlu0 %1453
  %v1456 = vadd.f32 %v1446, %v1454
  %v1457 = vtanh.pop %v1456
  %1459 = vrot.lane.b32.xlu0 %v1457, 64
  %v1460 = vpop.permute.xlu0 %1459
  %v1462 = vmul.f32 %v1445, %v1460
  %1464 = vrot.lane.b32.xlu0 %v1462, 32
  %v1465 = vpop.permute.xlu0 %1464
  %1467 = vst.msk [vmem:[#allocation3 + $0x20] sm:$0xff] %vm163, %v1465
  %v1468 = vpack.c.bf16 %v1318, %v1318
  %v1469 = vpack.c.bf16 %v1390, %v1390
  %v1470 = vpack.c.bf16 %v1462, %v1462
  %v1471 = vld [vmem:[#allocation2 + $0x38] sm:$0xff]
  %1473 = vrot.lane.b32.xlu0 %v1468, 32
  %v1474 = vpop.permute.xlu0 %1473
  %v1476 = vsel %vm163, %v1474, 0
  %1478 = vmatpush.bf16.msra.mxu0 0
  %1479 = vmatpush.bf16.msra.mxu0 0
  %1480 = vmatpush.bf16.msra.mxu0 0
  %1481 = vmatpush.bf16.msra.mxu0 0
  %1482 = vmatpush.bf16.msra.mxu0 0
  %1483 = vmatpush.bf16.msra.mxu0 0
  %1484 = vmatpush.bf16.msra.mxu0 %v160
  %1485 = vmatpush.bf16.msra.mxu0 %v159
  %1486 = vmatmul.bf16.gmra.mxu0 %v1476
  %v1487 = vpop.f32.mrf.mxu0
  %v1488 = vadd.f32 0.0, %v1487
  %v1489 = vpop.f32.mrf.mxu0
  %1490 = vdwg.mxu0
  %v1491 = vadd.f32 %v1471, %v1488
  %v1492 = vmul.f32 %v1491, %v29
  %v1493 = vxor.u32 %v1492, 2147483648
  %v1494 = vmul.f32 %v1493, 1.442695
  %v1495 = vpow.pop %v1494
  %v1496 = vadd.f32 %v1495, 1.0
  %v1497 = vrcp.pop %v1496
  %v1498 = vmul.f32 %v1496, %v1497
  %v1499 = vsub.f32 1.0, %v1498
  %v1500 = vmul.f32 %v1497, %v1499
  %v1501 = vadd.f32 %v1497, %v1500
  %vm1502 = vweird.f32 %v1496
  %vm1503 = vweird.f32 %v1497
  %vm1504 = vmor %vm1502, %vm1503
  %v1505 = vsel %vm1504, %v1497, %v1501
  %v1506 = vand.u32 2147483647, %v1496
  %vm1507 = vcmp.eq.f32.partialorder %v1506, 8.507059e+37
  %v1508 = vand.u32 %v1496, 2147483648
  %v1509 = vor.u32 1.1754944e-38, %v1508
  %v1510 = vsel %vm1507, %v1509, %v1505
  %v1511 = vmul.f32 1.0, %v1510
  %v1512 = vmul.f32 %v1511, %v29
  %v1513 = vadd.f32 %v1512, %v30
  %v1514 = vmul.f32 %v1513, %v1312
  %1516 = vrot.lane.b32.xlu0 %v1513, 64
  %v1517 = vpop.permute.xlu0 %1516
  %v1519 = vmul.f32 %v1513, %v1517
  %1521 = vrot.lane.b32.xlu0 %v1519, 32
  %v1522 = vpop.permute.xlu0 %1521
  %v1524 = vadd.f32 %v1514, %v1522
  %v1525 = vtanh.pop %v1524
  %1527 = vrot.lane.b32.xlu0 %v1525, 64
  %v1528 = vpop.permute.xlu0 %1527
  %v1530 = vmul.f32 %v1513, %v1528
  %1531 = vmatpush.bf16.msra.mxu0 0
  %1532 = vmatpush.bf16.msra.mxu0 0
  %1533 = vmatpush.bf16.msra.mxu0 0
  %1534 = vmatpush.bf16.msra.mxu0 0
  %1535 = vmatpush.bf16.msra.mxu0 0
  %1536 = vmatpush.bf16.msra.mxu0 0
  %1537 = vmatpush.bf16.msra.mxu0 %v295
  %1538 = vmatpush.bf16.msra.mxu0 %v294
  %1539 = vmatmul.bf16.gmra.mxu0 %v1476
  %v1540 = vpop.f32.mrf.mxu0
  %v1541 = vadd.f32 %v54, %v1540
  %v1542 = vpop.f32.mrf.mxu0
  %1543 = vdwg.mxu0
  %1545 = vrot.lane.b32.xlu0 %v1469, 32
  %v1546 = vpop.permute.xlu0 %1545
  %v1548 = vsel %vm163, %v1546, 0
  %1550 = vmatpush.bf16.msra.mxu0 0
  %1551 = vmatpush.bf16.msra.mxu0 0
  %1552 = vmatpush.bf16.msra.mxu0 0
  %1553 = vmatpush.bf16.msra.mxu0 0
  %1554 = vmatpush.bf16.msra.mxu0 0
  %1555 = vmatpush.bf16.msra.mxu0 0
  %1556 = vmatpush.bf16.msra.mxu0 %v320
  %1557 = vmatpush.bf16.msra.mxu0 %v319
  %1558 = vmatmul.bf16.gmra.mxu0 %v1548
  %v1559 = vpop.f32.mrf.mxu0
  %v1560 = vadd.f32 0.0, %v1559
  %v1561 = vpop.f32.mrf.mxu0
  %1562 = vdwg.mxu0
  %v1563 = vadd.f32 %v1541, %v1560
  %v1564 = vmul.f32 %v1563, %v29
  %v1565 = vxor.u32 %v1564, 2147483648
  %v1566 = vmul.f32 %v1565, 1.442695
  %v1567 = vpow.pop %v1566
  %v1568 = vadd.f32 %v1567, 1.0
  %v1569 = vrcp.pop %v1568
  %v1570 = vmul.f32 %v1568, %v1569
  %v1571 = vsub.f32 1.0, %v1570
  %v1572 = vmul.f32 %v1569, %v1571
  %v1573 = vadd.f32 %v1569, %v1572
  %vm1574 = vweird.f32 %v1568
  %vm1575 = vweird.f32 %v1569
  %vm1576 = vmor %vm1574, %vm1575
  %v1577 = vsel %vm1576, %v1569, %v1573
  %v1578 = vand.u32 2147483647, %v1568
  %vm1579 = vcmp.eq.f32.partialorder %v1578, 8.507059e+37
  %v1580 = vand.u32 %v1568, 2147483648
  %v1581 = vor.u32 1.1754944e-38, %v1580
  %v1582 = vsel %vm1579, %v1581, %v1577
  %v1583 = vmul.f32 1.0, %v1582
  %v1584 = vmul.f32 %v1583, %v29
  %v1585 = vadd.f32 %v1584, %v30
  %v1586 = vmul.f32 %v1585, %v1384
  %1588 = vrot.lane.b32.xlu0 %v1585, 64
  %v1589 = vpop.permute.xlu0 %1588
  %v1591 = vmul.f32 %v1585, %v1589
  %1593 = vrot.lane.b32.xlu0 %v1591, 32
  %v1594 = vpop.permute.xlu0 %1593
  %v1596 = vadd.f32 %v1586, %v1594
  %v1597 = vtanh.pop %v1596
  %1599 = vrot.lane.b32.xlu0 %v1597, 64
  %v1600 = vpop.permute.xlu0 %1599
  %v1602 = vmul.f32 %v1585, %v1600
  %1603 = vmatpush.bf16.msra.mxu0 0
  %1604 = vmatpush.bf16.msra.mxu0 0
  %1605 = vmatpush.bf16.msra.mxu0 0
  %1606 = vmatpush.bf16.msra.mxu0 0
  %1607 = vmatpush.bf16.msra.mxu0 0
  %1608 = vmatpush.bf16.msra.mxu0 0
  %1609 = vmatpush.bf16.msra.mxu0 %v527
  %1610 = vmatpush.bf16.msra.mxu0 %v526
  %1611 = vmatmul.bf16.gmra.mxu0 %v1548
  %v1612 = vpop.f32.mrf.mxu0
  %v1613 = vadd.f32 %v56, %v1612
  %v1614 = vpop.f32.mrf.mxu0
  %1615 = vdwg.mxu0
  %1617 = vrot.lane.b32.xlu0 %v1470, 32
  %v1618 = vpop.permute.xlu0 %1617
  %v1620 = vsel %vm163, %v1618, 0
  %1622 = vmatpush.bf16.msra.mxu0 0
  %1623 = vmatpush.bf16.msra.mxu0 0
  %1624 = vmatpush.bf16.msra.mxu0 0
  %1625 = vmatpush.bf16.msra.mxu0 0
  %1626 = vmatpush.bf16.msra.mxu0 0
  %1627 = vmatpush.bf16.msra.mxu0 0
  %1628 = vmatpush.bf16.msra.mxu0 %v552
  %1629 = vmatpush.bf16.msra.mxu0 %v551
  %1630 = vmatmul.bf16.gmra.mxu0 %v1620
  %v1631 = vpop.f32.mrf.mxu0
  %v1632 = vadd.f32 0.0, %v1631
  %v1633 = vpop.f32.mrf.mxu0
  %1634 = vdwg.mxu0
  %v1635 = vadd.f32 %v1613, %v1632
  %v1636 = vmul.f32 %v1635, %v29
  %v1637 = vxor.u32 %v1636, 2147483648
  %v1638 = vmul.f32 %v1637, 1.442695
  %v1639 = vpow.pop %v1638
  %v1640 = vadd.f32 %v1639, 1.0
  %v1641 = vrcp.pop %v1640
  %v1642 = vmul.f32 %v1640, %v1641
  %v1643 = vsub.f32 1.0, %v1642
  %v1644 = vmul.f32 %v1641, %v1643
  %v1645 = vadd.f32 %v1641, %v1644
  %vm1646 = vweird.f32 %v1640
  %vm1647 = vweird.f32 %v1641
  %vm1648 = vmor %vm1646, %vm1647
  %v1649 = vsel %vm1648, %v1641, %v1645
  %v1650 = vand.u32 2147483647, %v1640
  %vm1651 = vcmp.eq.f32.partialorder %v1650, 8.507059e+37
  %v1652 = vand.u32 %v1640, 2147483648
  %v1653 = vor.u32 1.1754944e-38, %v1652
  %v1654 = vsel %vm1651, %v1653, %v1649
  %v1655 = vmul.f32 1.0, %v1654
  %v1656 = vmul.f32 %v1655, %v29
  %v1657 = vadd.f32 %v1656, %v30
  %v1658 = vmul.f32 %v1657, %v1456
  %1660 = vrot.lane.b32.xlu0 %v1657, 64
  %v1661 = vpop.permute.xlu0 %1660
  %v1663 = vmul.f32 %v1657, %v1661
  %1665 = vrot.lane.b32.xlu0 %v1663, 32
  %v1666 = vpop.permute.xlu0 %1665
  %v1668 = vadd.f32 %v1658, %v1666
  %v1669 = vtanh.pop %v1668
  %1671 = vrot.lane.b32.xlu0 %v1669, 64
  %v1672 = vpop.permute.xlu0 %1671
  %v1674 = vmul.f32 %v1657, %v1672
  %1676 = vrot.lane.b32.xlu0 %v1674, 32
  %v1677 = vpop.permute.xlu0 %1676
  %1679 = vst.msk [vmem:[#allocation3 + $0x28] sm:$0xff] %vm163, %v1677
  %v1680 = vpack.c.bf16 %v1530, %v1530
  %v1681 = vpack.c.bf16 %v1602, %v1602
  %v1682 = vpack.c.bf16 %v1674, %v1674
  %1684 = vrot.lane.b32.xlu0 %v1680, 32
  %v1685 = vpop.permute.xlu0 %1684
  %v1687 = vsel %vm163, %v1685, 0
  %1689 = vmatpush.bf16.msra.mxu0 0
  %1690 = vmatpush.bf16.msra.mxu0 0
  %1691 = vmatpush.bf16.msra.mxu0 0
  %1692 = vmatpush.bf16.msra.mxu0 0
  %1693 = vmatpush.bf16.msra.mxu0 0
  %1694 = vmatpush.bf16.msra.mxu0 0
  %1695 = vmatpush.bf16.msra.mxu0 %v295
  %1696 = vmatpush.bf16.msra.mxu0 %v294
  %1697 = vmatmul.bf16.gmra.mxu0 %v1687
  %v1698 = vpop.f32.mrf.mxu0
  %v1699 = vadd.f32 %v54, %v1698
  %v1700 = vpop.f32.mrf.mxu0
  %1701 = vdwg.mxu0
  %1703 = vrot.lane.b32.xlu0 %v1681, 32
  %v1704 = vpop.permute.xlu0 %1703
  %v1706 = vsel %vm163, %v1704, 0
  %1708 = vmatpush.bf16.msra.mxu0 0
  %1709 = vmatpush.bf16.msra.mxu0 0
  %1710 = vmatpush.bf16.msra.mxu0 0
  %1711 = vmatpush.bf16.msra.mxu0 0
  %1712 = vmatpush.bf16.msra.mxu0 0
  %1713 = vmatpush.bf16.msra.mxu0 0
  %1714 = vmatpush.bf16.msra.mxu0 %v320
  %1715 = vmatpush.bf16.msra.mxu0 %v319
  %1716 = vmatmul.bf16.gmra.mxu0 %v1706
  %v1717 = vpop.f32.mrf.mxu0
  %v1718 = vadd.f32 0.0, %v1717
  %v1719 = vpop.f32.mrf.mxu0
  %1720 = vdwg.mxu0
  %v1721 = vadd.f32 %v1699, %v1718
  %v1722 = vmul.f32 %v1721, %v29
  %v1723 = vxor.u32 %v1722, 2147483648
  %v1724 = vmul.f32 %v1723, 1.442695
  %v1725 = vpow.pop %v1724
  %v1726 = vadd.f32 %v1725, 1.0
  %v1727 = vrcp.pop %v1726
  %v1728 = vmul.f32 %v1726, %v1727
  %v1729 = vsub.f32 1.0, %v1728
  %v1730 = vmul.f32 %v1727, %v1729
  %v1731 = vadd.f32 %v1727, %v1730
  %vm1732 = vweird.f32 %v1726
  %vm1733 = vweird.f32 %v1727
  %vm1734 = vmor %vm1732, %vm1733
  %v1735 = vsel %vm1734, %v1727, %v1731
  %v1736 = vand.u32 2147483647, %v1726
  %vm1737 = vcmp.eq.f32.partialorder %v1736, 8.507059e+37
  %v1738 = vand.u32 %v1726, 2147483648
  %v1739 = vor.u32 1.1754944e-38, %v1738
  %v1740 = vsel %vm1737, %v1739, %v1735
  %v1741 = vmul.f32 1.0, %v1740
  %v1742 = vmul.f32 %v1741, %v29
  %v1743 = vadd.f32 %v1742, %v30
  %v1744 = vmul.f32 %v1743, %v1596
  %1746 = vrot.lane.b32.xlu0 %v1743, 64
  %v1747 = vpop.permute.xlu0 %1746
  %v1749 = vmul.f32 %v1743, %v1747
  %1751 = vrot.lane.b32.xlu0 %v1749, 32
  %v1752 = vpop.permute.xlu0 %1751
  %v1754 = vadd.f32 %v1744, %v1752
  %v1755 = vtanh.pop %v1754
  %1757 = vrot.lane.b32.xlu0 %v1755, 64
  %v1758 = vpop.permute.xlu0 %1757
  %v1760 = vmul.f32 %v1743, %v1758
  %1761 = vmatpush.bf16.msra.mxu0 0
  %1762 = vmatpush.bf16.msra.mxu0 0
  %1763 = vmatpush.bf16.msra.mxu0 0
  %1764 = vmatpush.bf16.msra.mxu0 0
  %1765 = vmatpush.bf16.msra.mxu0 0
  %1766 = vmatpush.bf16.msra.mxu0 0
  %1767 = vmatpush.bf16.msra.mxu0 %v527
  %1768 = vmatpush.bf16.msra.mxu0 %v526
  %1769 = vmatmul.bf16.gmra.mxu0 %v1706
  %v1770 = vpop.f32.mrf.mxu0
  %v1771 = vadd.f32 %v56, %v1770
  %v1772 = vpop.f32.mrf.mxu0
  %1773 = vdwg.mxu0
  %1775 = vrot.lane.b32.xlu0 %v1682, 32
  %v1776 = vpop.permute.xlu0 %1775
  %v1778 = vsel %vm163, %v1776, 0
  %1780 = vmatpush.bf16.msra.mxu0 0
  %1781 = vmatpush.bf16.msra.mxu0 0
  %1782 = vmatpush.bf16.msra.mxu0 0
  %1783 = vmatpush.bf16.msra.mxu0 0
  %1784 = vmatpush.bf16.msra.mxu0 0
  %1785 = vmatpush.bf16.msra.mxu0 0
  %1786 = vmatpush.bf16.msra.mxu0 %v552
  %1787 = vmatpush.bf16.msra.mxu0 %v551
  %1788 = vmatmul.bf16.gmra.mxu0 %v1778
  %v1789 = vpop.f32.mrf.mxu0
  %v1790 = vadd.f32 0.0, %v1789
  %v1791 = vpop.f32.mrf.mxu0
  %1792 = vdwg.mxu0
  %v1793 = vadd.f32 %v1771, %v1790
  %v1794 = vmul.f32 %v1793, %v29
  %v1795 = vxor.u32 %v1794, 2147483648
  %v1796 = vmul.f32 %v1795, 1.442695
  %v1797 = vpow.pop %v1796
  %v1798 = vadd.f32 %v1797, 1.0
  %v1799 = vrcp.pop %v1798
  %v1800 = vmul.f32 %v1798, %v1799
  %v1801 = vsub.f32 1.0, %v1800
  %v1802 = vmul.f32 %v1799, %v1801
  %v1803 = vadd.f32 %v1799, %v1802
  %vm1804 = vweird.f32 %v1798
  %vm1805 = vweird.f32 %v1799
  %vm1806 = vmor %vm1804, %vm1805
  %v1807 = vsel %vm1806, %v1799, %v1803
  %v1808 = vand.u32 2147483647, %v1798
  %vm1809 = vcmp.eq.f32.partialorder %v1808, 8.507059e+37
  %v1810 = vand.u32 %v1798, 2147483648
  %v1811 = vor.u32 1.1754944e-38, %v1810
  %v1812 = vsel %vm1809, %v1811, %v1807
  %v1813 = vmul.f32 1.0, %v1812
  %v1814 = vmul.f32 %v1813, %v29
  %v1815 = vadd.f32 %v1814, %v30
  %v1816 = vmul.f32 %v1815, %v1668
  %1818 = vrot.lane.b32.xlu0 %v1815, 64
  %v1819 = vpop.permute.xlu0 %1818
  %v1821 = vmul.f32 %v1815, %v1819
  %1823 = vrot.lane.b32.xlu0 %v1821, 32
  %v1824 = vpop.permute.xlu0 %1823
  %v1826 = vadd.f32 %v1816, %v1824
  %v1827 = vtanh.pop %v1826
  %1829 = vrot.lane.b32.xlu0 %v1827, 64
  %v1830 = vpop.permute.xlu0 %1829
  %v1832 = vmul.f32 %v1815, %v1830
  %1834 = vrot.lane.b32.xlu0 %v1832, 32
  %v1835 = vpop.permute.xlu0 %1834
  %1837 = vst.msk [vmem:[#allocation3 + $0x30] sm:$0xff] %vm163, %v1835
  %v1838 = vpack.c.bf16 %v1760, %v1760
  %v1839 = vpack.c.bf16 %v1832, %v1832
  %1841 = vrot.lane.b32.xlu0 %v1838, 32
  %v1842 = vpop.permute.xlu0 %1841
  %v1844 = vsel %vm163, %v1842, 0
  %1846 = vmatpush.bf16.msra.mxu0 0
  %1847 = vmatpush.bf16.msra.mxu0 0
  %1848 = vmatpush.bf16.msra.mxu0 0
  %1849 = vmatpush.bf16.msra.mxu0 0
  %1850 = vmatpush.bf16.msra.mxu0 0
  %1851 = vmatpush.bf16.msra.mxu0 0
  %1852 = vmatpush.bf16.msra.mxu0 %v527
  %1853 = vmatpush.bf16.msra.mxu0 %v526
  %1854 = vmatmul.bf16.gmra.mxu0 %v1844
  %v1855 = vpop.f32.mrf.mxu0
  %v1856 = vadd.f32 %v56, %v1855
  %v1857 = vpop.f32.mrf.mxu0
  %1858 = vdwg.mxu0
  %1860 = vrot.lane.b32.xlu0 %v1839, 32
  %v1861 = vpop.permute.xlu0 %1860
  %v1863 = vsel %vm163, %v1861, 0
  %1865 = vmatpush.bf16.msra.mxu0 0
  %1866 = vmatpush.bf16.msra.mxu0 0
  %1867 = vmatpush.bf16.msra.mxu0 0
  %1868 = vmatpush.bf16.msra.mxu0 0
  %1869 = vmatpush.bf16.msra.mxu0 0
  %1870 = vmatpush.bf16.msra.mxu0 0
  %1871 = vmatpush.bf16.msra.mxu0 %v552
  %1872 = vmatpush.bf16.msra.mxu0 %v551
  %1873 = vmatmul.bf16.gmra.mxu0 %v1863
  %v1874 = vpop.f32.mrf.mxu0
  %v1875 = vadd.f32 0.0, %v1874
  %v1876 = vpop.f32.mrf.mxu0
  %1877 = vdwg.mxu0
  %v1878 = vadd.f32 %v1856, %v1875
  %v1879 = vmul.f32 %v1878, %v29
  %v1880 = vxor.u32 %v1879, 2147483648
  %v1881 = vmul.f32 %v1880, 1.442695
  %v1882 = vpow.pop %v1881
  %v1883 = vadd.f32 %v1882, 1.0
  %v1884 = vrcp.pop %v1883
  %v1885 = vmul.f32 %v1883, %v1884
  %v1886 = vsub.f32 1.0, %v1885
  %v1887 = vmul.f32 %v1884, %v1886
  %v1888 = vadd.f32 %v1884, %v1887
  %vm1889 = vweird.f32 %v1883
  %vm1890 = vweird.f32 %v1884
  %vm1891 = vmor %vm1889, %vm1890
  %v1892 = vsel %vm1891, %v1884, %v1888
  %v1893 = vand.u32 2147483647, %v1883
  %vm1894 = vcmp.eq.f32.partialorder %v1893, 8.507059e+37
  %v1895 = vand.u32 %v1883, 2147483648
  %v1896 = vor.u32 1.1754944e-38, %v1895
  %v1897 = vsel %vm1894, %v1896, %v1892
  %v1898 = vmul.f32 1.0, %v1897
  %v1899 = vmul.f32 %v1898, %v29
  %v1900 = vadd.f32 %v1899, %v30
  %v1901 = vmul.f32 %v1900, %v1826
  %1903 = vrot.lane.b32.xlu0 %v1900, 64
  %v1904 = vpop.permute.xlu0 %1903
  %v1906 = vmul.f32 %v1900, %v1904
  %1908 = vrot.lane.b32.xlu0 %v1906, 32
  %v1909 = vpop.permute.xlu0 %1908
  %v1911 = vadd.f32 %v1901, %v1909
  %v1912 = vtanh.pop %v1911
  %1914 = vrot.lane.b32.xlu0 %v1912, 64
  %v1915 = vpop.permute.xlu0 %1914
  %v1917 = vmul.f32 %v1900, %v1915
  %1919 = vrot.lane.b32.xlu0 %v1917, 32
  %v1920 = vpop.permute.xlu0 %1919
  %1922 = vst.msk [vmem:[#allocation3 + $0x38] sm:$0xff] %vm163, %v1920
  %v1923 = vld [vmem:[#allocation3] sm:$0xff]
  %v1924 = vld [vmem:[#allocation3 + $0x8] sm:$0xff]
  %v1925 = vld [vmem:[#allocation3 + $0x10] sm:$0xff]
  %v1926 = vld [vmem:[#allocation3 + $0x18] sm:$0xff]
  %v1927 = vld [vmem:[#allocation3 + $0x20] sm:$0xff]
  %v1928 = vld [vmem:[#allocation3 + $0x28] sm:$0xff]
  %v1929 = vld [vmem:[#allocation3 + $0x30] sm:$0xff]
  %v1930 = vld [vmem:[#allocation3 + $0x38] sm:$0xff]
  %v1931 = vld [vmem:[%s4] sm:$0xff]
  %v1932 = vld [vmem:[%s4 + $0x8] sm:$0xff]
  %v1933 = vld [vmem:[%s4 + $0x10] sm:$0xff]
  %v1934 = vld [vmem:[%s4 + $0x18] sm:$0xff]
  %v1935 = vld [vmem:[%s5] sm:$0x1]
  %v1937 = vperm.slane %v1935, 0
  %v1940 = vsel %vm163, %v1923, 0
  %v1943 = vsel %vm163, %v1924, 0
  %v1946 = vsel %vm163, %v1925, 0
  %v1949 = vsel %vm163, %v1926, 0
  %v1952 = vsel %vm163, %v1927, 0
  %v1955 = vsel %vm163, %v1928, 0
  %v1958 = vsel %vm163, %v1929, 0
  %v1961 = vsel %vm163, %v1930, 0
  %1963 = vmatpush.msra.mxu0 0.0
  %1964 = vmatpush.msra.mxu0 0.0
  %1965 = vmatpush.msra.mxu0 0.0
  %1966 = vmatpush.msra.mxu0 0.0
  %1967 = vmatpush.msra.mxu0 0.0
  %1968 = vmatpush.msra.mxu0 0.0
  %1969 = vmatpush.msra.mxu0 0.0
  %1970 = vmatpush.msra.mxu0 0.0
  %1971 = vmatpush.msra.mxu0 0.0
  %1972 = vmatpush.msra.mxu0 0.0
  %1973 = vmatpush.msra.mxu0 0.0
  %1974 = vmatpush.msra.mxu0 0.0
  %1975 = vmatpush.msra.mxu0 %v1934
  %1976 = vmatpush.msra.mxu0 %v1933
  %1977 = vmatpush.msra.mxu0 %v1932
  %1978 = vmatpush.msra.mxu0 %v1931
  %1979 = vmatmul.f32.gmra.mxu0 %v1940
  %v1980 = vpop.f32.mrf.mxu0
  %v1981 = vadd.f32 %v1937, %v1980
  %1982 = vmatmul.f32.gmra.mxu0 %v1943
  %v1983 = vpop.f32.mrf.mxu0
  %v1984 = vadd.f32 %v1937, %v1983
  %1985 = vmatmul.f32.gmra.mxu0 %v1946
  %v1986 = vpop.f32.mrf.mxu0
  %v1987 = vadd.f32 %v1937, %v1986
  %1988 = vmatmul.f32.gmra.mxu0 %v1949
  %v1989 = vpop.f32.mrf.mxu0
  %v1990 = vadd.f32 %v1937, %v1989
  %1991 = vmatmul.f32.gmra.mxu0 %v1952
  %v1992 = vpop.f32.mrf.mxu0
  %v1993 = vadd.f32 %v1937, %v1992
  %1994 = vmatmul.f32.gmra.mxu0 %v1955
  %v1995 = vpop.f32.mrf.mxu0
  %v1996 = vadd.f32 %v1937, %v1995
  %1997 = vmatmul.f32.gmra.mxu0 %v1958
  %v1998 = vpop.f32.mrf.mxu0
  %v1999 = vadd.f32 %v1937, %v1998
  %2000 = vmatmul.f32.gmra.mxu0 %v1961
  %v2001 = vpop.f32.mrf.mxu0
  %v2002 = vadd.f32 %v1937, %v2001
  %2003 = vdwg.mxu0
  %2004 = vst.msk [vmem:[%s6] sm:$0xff] %vm93, %v1981
  %2005 = vst.msk [vmem:[%s6 + $0x8] sm:$0xff] %vm93, %v1984
  %2006 = vst.msk [vmem:[%s6 + $0x10] sm:$0xff] %vm93, %v1987
  %2007 = vst.msk [vmem:[%s6 + $0x18] sm:$0xff] %vm93, %v1990
  %2008 = vst.msk [vmem:[%s6 + $0x20] sm:$0xff] %vm93, %v1993
  %2009 = vst.msk [vmem:[%s6 + $0x28] sm:$0xff] %vm93, %v1996
  %2010 = vst.msk [vmem:[%s6 + $0x30] sm:$0xff] %vm93, %v1999
  %2011 = vst.msk [vmem:[%s6 + $0x38] sm:$0xff] %vm93, %v2002
  // Predicated region
  $region26: #{tpu_custom_call.1} parent=0 // pred_check
    _
  $region27: #{tpu_custom_call.1} parent=0 // pred_check_branch
    %2013 = sbr.rel (0) target = $region29
  $region28: #{tpu_custom_call.1} parent=0 // pred_region
    _
  $region29: #{tpu_custom_call.1} parent=0 // pred_fallthru
    _
  // Predicated region
  $region30: #{tpu_custom_call.1} parent=0 // pred_check
    _
  $region31: #{tpu_custom_call.1} parent=0 // pred_check_branch
    %2015 = sbr.rel (0) target = $region33
  $region32: #{tpu_custom_call.1} parent=0 // pred_region
    _
  $region33: #{tpu_custom_call.1} parent=0 // pred_fallthru
    _

</llo_original>
